<compile_context>
chip_gen: v7x
topology: tpu7x:2x2x1
jax: 0.10.0
libtpu: 0.0.40
codegen_flags: <defaults>
</compile_context>

<pallas_src>
import functools

import jax
import jax.numpy as jnp
from jax import lax
from jax.experimental import pallas as pl
from jax.experimental.pallas import tpu as pltpu

BN_EPS = 1e-5

# Per-grid-step x payload target: >= ~2 MiB keeps DMA time well above the
# fixed per-step pipeline overhead and near the HBM roofline.
TARGET_BLOCK_BYTES = 2 * 1024 * 1024


def _default_vmem_limit_bytes():
    """Generation-aware scoped-VMEM budget (~48 MiB on v7x, ~112 MiB on v5e/v6e)."""
    cap = None
    try:
        cap = int(getattr(pltpu.get_tpu_info(), "vmem_capacity_bytes", 0)) or None
    except Exception:
        cap = None
    if cap is None:
        cap = 64 * 1024 * 1024  # conservative fallback: v7x has 64 MiB per TC
    return int(min(max(cap - 16 * 1024 * 1024, 32 * 1024 * 1024),
                   112 * 1024 * 1024))


VMEM_LIMIT_BYTES = _default_vmem_limit_bytes()


def _round_down_128(v):
    return max(128, (v // 128) * 128)


def _choose_tiles(N, C_in, C_out, L, vmem_limit):
    """Pick (nb, tile_l) so each step's x block is ~TARGET_BLOCK_BYTES and the
    double-buffered x/out blocks (plus f32 intermediates) fit the VMEM budget."""
    L128 = 128 * pl.cdiv(L, 128)
    # bytes per lane-column per step: 2x-buffered x + 2x-buffered out + ~3 f32
    # (C_out, tile_l) intermediates inside the kernel.
    per_col = 8 * (C_in + C_out) + 12 * C_out
    cols_cap = max(128, (vmem_limit // 2) // per_col)
    cols_target = max(128, TARGET_BLOCK_BYTES // (4 * C_in))
    cols = min(cols_cap, cols_target)

    tile_l = min(L128, _round_down_128(cols))
    if tile_l >= L128:
        # L fits in one tile: widen the block over the batch axis instead so a
        # single grid step still moves ~TARGET_BLOCK_BYTES.
        tile_l = L128
        nb = int(min(N, max(1, cols // tile_l)))
    else:
        nb = 1
    return nb, tile_l


def _stats_kernel(x_ref, xsum_ref, gram_ref):
    """Phase 1: per-batch-block partial moments of x: sum(x) and x @ x^T."""
    @pl.when(pl.program_id(1) == 0)
    def _init():
        xsum_ref[...] = jnp.zeros_like(xsum_ref)
        gram_ref[...] = jnp.zeros_like(gram_ref)

    nb, c_in, _ = x_ref.shape

    def body(b, carry):
        s, g = carry
        xb = x_ref[b].astype(jnp.float32)             # (C_in, tile_l)
        s = s + jnp.sum(xb, axis=1, keepdims=True)    # (C_in, 1)
        g = g + lax.dot_general(xb, xb, (((1,), (1,)), ((), ())),
                                preferred_element_type=jnp.float32)  # (C_in, C_in)
        return s, g

    s, g = lax.fori_loop(
        0, nb, body,
        (jnp.zeros((c_in, 1), jnp.float32),
         jnp.zeros((c_in, c_in), jnp.float32)),
        unroll=True)
    xsum_ref[0] += s
    gram_ref[0] += g


def _apply_kernel(x_ref, w1_ref, w2_ref, scale_ref, shift_ref, o_ref, *, mxu_dtype):
    """Phase 2: y = W2 @ relu((W1 @ x) * scale + shift), lane-dense blocks."""
    w1 = w1_ref[...].astype(mxu_dtype)        # (C_out, C_in)
    w2 = w2_ref[...].astype(mxu_dtype)        # (C_out, C_out)
    scale = scale_ref[...]                    # (C_out, 1) f32
    shift = shift_ref[...]                    # (C_out, 1) f32
    nb = x_ref.shape[0]

    def body(b, carry):
        x = x_ref[b].astype(mxu_dtype)        # (C_in, tile_l)
        h = lax.dot_general(w1, x, (((1,), (0,)), ((), ())),
                            preferred_element_type=jnp.float32)   # (C_out, tile_l)
        h = jnp.maximum(h * scale + shift, 0.0)                    # BN + ReLU, f32
        out = lax.dot_general(w2, h.astype(mxu_dtype), (((1,), (0,)), ((), ())),
                              preferred_element_type=jnp.float32)  # (C_out, tile_l)
        o_ref[b] = out.astype(o_ref.dtype)
        return carry

    lax.fori_loop(0, nb, body, 0, unroll=True)


@functools.partial(jax.jit,
                   static_argnames=("tile_l", "batch_block", "mxu_dtype"))
def conv1d_bn_relu(x, w1, w2, gamma, beta, tile_l=None, batch_block=None,
                   mxu_dtype=jnp.float32):
    """x: (N, C_in, L); w1: (C_out, C_in, 1); w2: (C_out, C_out, 1)."""
    N, C_in, L = x.shape
    C_out = w1.shape[0]

    nb_auto, tl_auto = _choose_tiles(N, C_in, C_out, L, VMEM_LIMIT_BYTES)
    nb = int(batch_block) if batch_block is not None else nb_auto
    tl = int(tile_l) if tile_l is not None else tl_auto
    assert tl % 128 == 0, tl
    assert nb >= 1, nb

    L_pad = tl * pl.cdiv(L, tl)
    N_pad = nb * pl.cdiv(N, nb)
    if (N_pad, L_pad) != (N, L):
        # Zero padding is stats-safe: conv1 has no bias, so padded tokens
        # contribute 0 to sum(x) / x@x^T, and the true count M = N*L is used.
        x = jnp.pad(x, ((0, N_pad - N), (0, 0), (0, L_pad - L)))

    w1_2d = w1[:, :, 0]        # (C_out, C_in) -- no transposes anywhere
    w2_2d = w2[:, :, 0]        # (C_out, C_out)

    n_blocks = N_pad // nb
    grid = (n_blocks, L_pad // tl)

    x_spec = pl.BlockSpec((nb, C_in, tl), lambda n, l: (n, 0, l))
    w1_spec = pl.BlockSpec((C_out, C_in), lambda n, l: (0, 0))
    w2_spec = pl.BlockSpec((C_out, C_out), lambda n, l: (0, 0))
    vec_spec = pl.BlockSpec((C_out, 1), lambda n, l: (0, 0))

    # ---- phase 1: per-batch-block partial x-moments --------------------------
    # N axis "parallel" (feeds both v7x TensorCores), L axis is the sequential
    # accumulation axis.
    xsum_p, gram_p = pl.pallas_call(
        _stats_kernel,
        out_shape=(jax.ShapeDtypeStruct((n_blocks, C_in, 1), jnp.float32),
                   jax.ShapeDtypeStruct((n_blocks, C_in, C_in), jnp.float32)),
        grid=grid,
        in_specs=[x_spec],
        out_specs=(pl.BlockSpec((1, C_in, 1), lambda n, l: (n, 0, 0)),
                   pl.BlockSpec((1, C_in, C_in), lambda n, l: (n, 0, 0))),
        compiler_params=pltpu.CompilerParams(
            dimension_semantics=("parallel", "arbitrary"),
            vmem_limit_bytes=VMEM_LIMIT_BYTES),
    )(x)

    # Finalize train-mode BN (biased variance, eps=1e-5) from x moments in f32:
    #   mean_h = W1 @ mean(x),   E[h^2]_c = w1_c (x x^T / M) w1_c^T.
    M = float(N * L)                       # true token count (excludes padding)
    xsum = jnp.sum(xsum_p, axis=0)         # (C_in, 1) hierarchical f32 reduce
    gram = jnp.sum(gram_p, axis=0)         # (C_in, C_in)
    w1f = w1_2d.astype(jnp.float32)
    mean = (w1f @ xsum) / M                                         # (C_out, 1)
    e_h2 = jnp.sum((w1f @ gram) * w1f, axis=1, keepdims=True) / M   # (C_out, 1)
    var = jnp.maximum(e_h2 - mean * mean, 0.0)
    scale = gamma.reshape(C_out, 1).astype(jnp.float32) * lax.rsqrt(var + BN_EPS)
    shift = beta.reshape(C_out, 1).astype(jnp.float32) - mean * scale
    # TODO(synk): BatchNorm1d running_mean/running_var EMA buffer updates are
    # training-state side effects and are not produced here (forward output only).

    # ---- phase 2: normalize + ReLU + conv2, lane-dense (nb, C_out, tl) blocks
    out = pl.pallas_call(
        functools.partial(_apply_kernel, mxu_dtype=mxu_dtype),
        out_shape=jax.ShapeDtypeStruct((N_pad, C_out, L_pad), x.dtype),
        grid=grid,
        in_specs=[x_spec, w1_spec, w2_spec, vec_spec, vec_spec],
        out_specs=pl.BlockSpec((nb, C_out, tl), lambda n, l: (n, 0, l)),
        compiler_params=pltpu.CompilerParams(
            dimension_semantics=("parallel", "parallel"),
            vmem_limit_bytes=VMEM_LIMIT_BYTES),
    )(x, w1_2d, w2_2d, scale, shift)

    if (N_pad, L_pad) != (N, L):
        out = out[:N, :, :L]
    return out


def _reference(x, w1, w2, gamma, beta):
    # Pure-JAX f32 reference mirroring the PyTorch module (train-mode BN).
    h = jnp.einsum("ncl,oc->nol", x, w1[:, :, 0])
    mean = jnp.mean(h, axis=(0, 2), keepdims=True)
    var = jnp.mean((h - mean) ** 2, axis=(0, 2), keepdims=True)
    h = (h - mean) / jnp.sqrt(var + BN_EPS)
    h = h * gamma[None, :, None] + beta[None, :, None]
    h = jnp.maximum(h, 0.0)
    return jnp.einsum("ncl,oc->nol", h, w2[:, :, 0])


if __name__ == "__main__":
    key = jax.random.PRNGKey(0)

    def run_case(N, C_in, C_out, L, case_key, mxu_dtype=jnp.float32,
                 tile_l=None, batch_block=None, atol=1e-4, rtol=1e-4):
        kx, k1, k2, kg, kb = jax.random.split(case_key, 5)
        x = jax.random.normal(kx, (N, C_in, L), dtype=jnp.float32)
        w1 = jax.random.normal(k1, (C_out, C_in, 1), jnp.float32) * (1.0 / C_in) ** 0.5
        w2 = jax.random.normal(k2, (C_out, C_out, 1), jnp.float32) * (1.0 / C_out) ** 0.5
        gamma = 1.0 + 0.1 * jax.random.normal(kg, (C_out,), jnp.float32)
        beta = 0.1 * jax.random.normal(kb, (C_out,), jnp.float32)

        out = jax.block_until_ready(
            conv1d_bn_relu(x, w1, w2, gamma, beta, tile_l=tile_l,
                           batch_block=batch_block, mxu_dtype=mxu_dtype))
        ref = _reference(x, w1, w2, gamma, beta)
        assert out.shape == (N, C_out, L), out.shape
        err = float(jnp.max(jnp.abs(out - ref)))
        assert jnp.allclose(out, ref, atol=atol, rtol=rtol), err

    ka, kb, kc = jax.random.split(key, 3)
    # Auto tiling: whole problem lands in one lane-dense (2, 16, 384) block.
    run_case(N=2, C_in=16, C_out=32, L=384, case_key=ka)
    # Forced multi-tile grid: ragged L (pads 200 -> 256), tiny C_in, exercises
    # the per-batch-block accumulation across the L axis and the padding path.
    run_case(N=2, C_in=3, C_out=64, L=200, case_key=kb, tile_l=128, batch_block=1)
    # bf16 MXU path (BN statistics and epilogue stay f32), looser tolerance.
    run_case(N=2, C_in=16, C_out=32, L=384, case_key=kc,
             mxu_dtype=jnp.bfloat16, atol=5e-2, rtol=5e-2)

    print("KERNEL_OK")
</pallas_src>

<mosaic_0001>
module attributes {stable_mosaic.version = 11 : i64} {
  func.func @_stats_kernel(%arg0: i32, %arg1: i32, %arg2: memref<2x16x384xf32, #tpu.memory_space<vmem>>, %arg3: memref<1x16x1xf32, #tpu.memory_space<vmem>>, %arg4: memref<1x16x16xf32, #tpu.memory_space<vmem>>) attributes {dimension_semantics = [#tpu.dimension_semantics<parallel>, #tpu.dimension_semantics<arbitrary>], iteration_bounds = array<i64: 1, 1>, scalar_prefetch = 0 : i64, scratch_operands = 0 : i64, tpu.core_type = #tpu.core_type<tc>, window_params = [{transform_indices = @transform_0, window_bounds = array<i64: 2, 16, 384>}, {transform_indices = @transform_1, window_bounds = array<i64: 1, 16, 1>}, {transform_indices = @transform_2, window_bounds = array<i64: 1, 16, 16>}]} {
    %c0_i32 = arith.constant 0 : i32
    %0 = arith.cmpi eq, %arg1, %c0_i32 : i32
    %1 = arith.extui %0 : i1 to i32
    %c0_i32_0 = arith.constant 0 : i32
    %2 = arith.cmpi ne, %1, %c0_i32_0 : i32
    scf.if %2 {
      %cst_22 = arith.constant 0.000000e+00 : f32
      %33 = vector.broadcast %cst_22 : f32 to vector<1x16x1xf32>
      %c0_23 = arith.constant 0 : index
      %c0_24 = arith.constant 0 : index
      %c0_25 = arith.constant 0 : index
      %34 = vector.load %arg3[%c0_23, %c0_24, %c0_25] : memref<1x16x1xf32, #tpu.memory_space<vmem>>, vector<1x16x1xf32>
      tpu.vector_store %arg3[%c0_23, %c0_24, %c0_25], %33 {strides = array<i32>} : memref<1x16x1xf32, #tpu.memory_space<vmem>>, vector<1x16x1xf32>,
      %cst_26 = arith.constant 0.000000e+00 : f32
      %35 = vector.broadcast %cst_26 : f32 to vector<1x16x16xf32>
      %c0_27 = arith.constant 0 : index
      %c0_28 = arith.constant 0 : index
      %c0_29 = arith.constant 0 : index
      %36 = vector.load %arg4[%c0_27, %c0_28, %c0_29] : memref<1x16x16xf32, #tpu.memory_space<vmem>>, vector<1x16x16xf32>
      tpu.vector_store %arg4[%c0_27, %c0_28, %c0_29], %35 {strides = array<i32>} : memref<1x16x16xf32, #tpu.memory_space<vmem>>, vector<1x16x16xf32>,
    } else {
    }
    %cst = arith.constant 0.000000e+00 : f32
    %3 = vector.broadcast %cst : f32 to vector<16x1xf32>
    %cst_1 = arith.constant 0.000000e+00 : f32
    %4 = vector.broadcast %cst_1 : f32 to vector<16x16xf32>
    %c0_i32_2 = arith.constant 0 : i32
    %5 = arith.index_cast %c0_i32_2 : i32 to index
    %c0 = arith.constant 0 : index
    %c0_3 = arith.constant 0 : index
    %6 = vector.load %arg2[%5, %c0, %c0_3] : memref<2x16x384xf32, #tpu.memory_space<vmem>>, vector<1x16x384xf32>
    %7 = vector.shape_cast %6 : vector<1x16x384xf32> to vector<16x384xf32>
    %cst_4 = arith.constant dense<0.000000e+00> : vector<16xf32>
    %8 = vector.multi_reduction <add>, %7, %cst_4 [1] : vector<16x384xf32> to vector<16xf32>
    %9 = vector.shape_cast %8 : vector<16xf32> to vector<16x1xf32>
    %10 = arith.addf %3, %9 : vector<16x1xf32>
    %cst_5 = arith.constant dense<0.000000e+00> : vector<16x16xf32>
    %11 = tpu.matmul %7, %7, %cst_5 {dimension_numbers = #tpu.dot_dimension_numbers<[1], [1], [0], [0], [0, 0, 1, 0], [], []>} : vector<16x384xf32>, vector<16x384xf32>, vector<16x16xf32> -> vector<16x16xf32>
    %12 = arith.addf %4, %11 : vector<16x16xf32>
    %c1_i32 = arith.constant 1 : i32
    %13 = arith.index_cast %c1_i32 : i32 to index
    %c0_6 = arith.constant 0 : index
    %c0_7 = arith.constant 0 : index
    %14 = vector.load %arg2[%13, %c0_6, %c0_7] : memref<2x16x384xf32, #tpu.memory_space<vmem>>, vector<1x16x384xf32>
    %15 = vector.shape_cast %14 : vector<1x16x384xf32> to vector<16x384xf32>
    %cst_8 = arith.constant dense<0.000000e+00> : vector<16xf32>
    %16 = vector.multi_reduction <add>, %15, %cst_8 [1] : vector<16x384xf32> to vector<16xf32>
    %17 = vector.shape_cast %16 : vector<16xf32> to vector<16x1xf32>
    %18 = arith.addf %10, %17 : vector<16x1xf32>
    %cst_9 = arith.constant dense<0.000000e+00> : vector<16x16xf32>
    %19 = tpu.matmul %15, %15, %cst_9 {dimension_numbers = #tpu.dot_dimension_numbers<[1], [1], [0], [0], [0, 0, 1, 0], [], []>} : vector<16x384xf32>, vector<16x384xf32>, vector<16x16xf32> -> vector<16x16xf32>
    %20 = arith.addf %12, %19 : vector<16x16xf32>
    %c2_i32 = arith.constant 2 : i32
    %c0_10 = arith.constant 0 : index
    %c0_11 = arith.constant 0 : index
    %c0_12 = arith.constant 0 : index
    %21 = vector.load %arg3[%c0_10, %c0_11, %c0_12] : memref<1x16x1xf32, #tpu.memory_space<vmem>>, vector<1x16x1xf32>
    %22 = vector.shape_cast %21 : vector<1x16x1xf32> to vector<16x1xf32>
    %23 = arith.addf %22, %18 : vector<16x1xf32>
    %c0_13 = arith.constant 0 : index
    %c0_14 = arith.constant 0 : index
    %c0_15 = arith.constant 0 : index
    %24 = vector.load %arg3[%c0_13, %c0_14, %c0_15] : memref<1x16x1xf32, #tpu.memory_space<vmem>>, vector<1x16x1xf32>
    %25 = vector.shape_cast %24 : vector<1x16x1xf32> to vector<16x1xf32>
    %26 = vector.shape_cast %23 : vector<16x1xf32> to vector<1x16x1xf32>
    tpu.vector_store %arg3[%c0_13, %c0_14, %c0_15], %26 {strides = array<i32>} : memref<1x16x1xf32, #tpu.memory_space<vmem>>, vector<1x16x1xf32>,
    %c0_16 = arith.constant 0 : index
    %c0_17 = arith.constant 0 : index
    %c0_18 = arith.constant 0 : index
    %27 = vector.load %arg4[%c0_16, %c0_17, %c0_18] : memref<1x16x16xf32, #tpu.memory_space<vmem>>, vector<1x16x16xf32>
    %28 = vector.shape_cast %27 : vector<1x16x16xf32> to vector<16x16xf32>
    %29 = arith.addf %28, %20 : vector<16x16xf32>
    %c0_19 = arith.constant 0 : index
    %c0_20 = arith.constant 0 : index
    %c0_21 = arith.constant 0 : index
    %30 = vector.load %arg4[%c0_19, %c0_20, %c0_21] : memref<1x16x16xf32, #tpu.memory_space<vmem>>, vector<1x16x16xf32>
    %31 = vector.shape_cast %30 : vector<1x16x16xf32> to vector<16x16xf32>
    %32 = vector.shape_cast %29 : vector<16x16xf32> to vector<1x16x16xf32>
    tpu.vector_store %arg4[%c0_19, %c0_20, %c0_21], %32 {strides = array<i32>} : memref<1x16x16xf32, #tpu.memory_space<vmem>>, vector<1x16x16xf32>,
    return
  }
  func.func @transform_0(%arg0: i32, %arg1: i32) -> (i32, i32, i32) {
    %c0_i32 = arith.constant 0 : i32
    %c0_i32_0 = arith.constant 0 : i32
    return %arg0, %c0_i32, %arg1 : i32, i32, i32
  }
  func.func @transform_1(%arg0: i32, %arg1: i32) -> (i32, i32, i32) {
    %c0_i32 = arith.constant 0 : i32
    %c0_i32_0 = arith.constant 0 : i32
    %c0_i32_1 = arith.constant 0 : i32
    return %arg0, %c0_i32, %c0_i32_0 : i32, i32, i32
  }
  func.func @transform_2(%arg0: i32, %arg1: i32) -> (i32, i32, i32) {
    %c0_i32 = arith.constant 0 : i32
    %c0_i32_0 = arith.constant 0 : i32
    %c0_i32_1 = arith.constant 0 : i32
    return %arg0, %c0_i32, %c0_i32_0 : i32, i32, i32
  }
}

module attributes {stable_mosaic.version = 11 : i64} {
  func.func @_apply_kernel(%arg0: i32, %arg1: i32, %arg2: memref<2x16x384xf32, #tpu.memory_space<vmem>>, %arg3: memref<32x16xf32, #tpu.memory_space<vmem>>, %arg4: memref<32x32xf32, #tpu.memory_space<vmem>>, %arg5: memref<32x1xf32, #tpu.memory_space<vmem>>, %arg6: memref<32x1xf32, #tpu.memory_space<vmem>>, %arg7: memref<2x32x384xf32, #tpu.memory_space<vmem>>) attributes {dimension_semantics = [#tpu.dimension_semantics<parallel>, #tpu.dimension_semantics<parallel>], iteration_bounds = array<i64: 1, 1>, scalar_prefetch = 0 : i64, scratch_operands = 0 : i64, tpu.core_type = #tpu.core_type<tc>, window_params = [{transform_indices = @transform_0, window_bounds = array<i64: 2, 16, 384>}, {pipeline_mode = #tpu.pipeline_mode<synchronous>, transform_indices = @transform_1, window_bounds = array<i64: 32, 16>}, {pipeline_mode = #tpu.pipeline_mode<synchronous>, transform_indices = @transform_2, window_bounds = array<i64: 32, 32>}, {pipeline_mode = #tpu.pipeline_mode<synchronous>, transform_indices = @transform_3, window_bounds = array<i64: 32, 1>}, {pipeline_mode = #tpu.pipeline_mode<synchronous>, transform_indices = @transform_4, window_bounds = array<i64: 32, 1>}, {transform_indices = @transform_5, window_bounds = array<i64: 2, 32, 384>}]} {
    %c0 = arith.constant 0 : index
    %c0_0 = arith.constant 0 : index
    %0 = vector.load %arg3[%c0, %c0_0] : memref<32x16xf32, #tpu.memory_space<vmem>>, vector<32x16xf32>
    %c0_1 = arith.constant 0 : index
    %c0_2 = arith.constant 0 : index
    %1 = vector.load %arg4[%c0_1, %c0_2] : memref<32x32xf32, #tpu.memory_space<vmem>>, vector<32x32xf32>
    %c0_3 = arith.constant 0 : index
    %c0_4 = arith.constant 0 : index
    %2 = vector.load %arg5[%c0_3, %c0_4] : memref<32x1xf32, #tpu.memory_space<vmem>>, vector<32x1xf32>
    %c0_5 = arith.constant 0 : index
    %c0_6 = arith.constant 0 : index
    %3 = vector.load %arg6[%c0_5, %c0_6] : memref<32x1xf32, #tpu.memory_space<vmem>>, vector<32x1xf32>
    %c0_i32 = arith.constant 0 : i32
    %4 = arith.index_cast %c0_i32 : i32 to index
    %c0_7 = arith.constant 0 : index
    %c0_8 = arith.constant 0 : index
    %5 = vector.load %arg2[%4, %c0_7, %c0_8] : memref<2x16x384xf32, #tpu.memory_space<vmem>>, vector<1x16x384xf32>
    %6 = vector.shape_cast %5 : vector<1x16x384xf32> to vector<16x384xf32>
    %cst = arith.constant dense<0.000000e+00> : vector<32x384xf32>
    %7 = tpu.matmul %0, %6, %cst {dimension_numbers = #tpu.dot_dimension_numbers<[1], [0], [0], [1], [0, 0, 1, 1], [], []>} : vector<32x16xf32>, vector<16x384xf32>, vector<32x384xf32> -> vector<32x384xf32>
    %8 = vector.broadcast %2 : vector<32x1xf32> to vector<32x384xf32>
    %9 = arith.mulf %7, %8 : vector<32x384xf32>
    %10 = vector.broadcast %3 : vector<32x1xf32> to vector<32x384xf32>
    %11 = arith.addf %9, %10 : vector<32x384xf32>
    %cst_9 = arith.constant 0.000000e+00 : f32
    %12 = vector.broadcast %cst_9 : f32 to vector<32x384xf32>
    %13 = arith.maximumf %11, %12 : vector<32x384xf32>
    %cst_10 = arith.constant dense<0.000000e+00> : vector<32x384xf32>
    %14 = tpu.matmul %1, %13, %cst_10 {dimension_numbers = #tpu.dot_dimension_numbers<[1], [0], [0], [1], [0, 0, 1, 1], [], []>} : vector<32x32xf32>, vector<32x384xf32>, vector<32x384xf32> -> vector<32x384xf32>
    %15 = arith.index_cast %c0_i32 : i32 to index
    %c0_11 = arith.constant 0 : index
    %c0_12 = arith.constant 0 : index
    %16 = vector.load %arg7[%15, %c0_11, %c0_12] : memref<2x32x384xf32, #tpu.memory_space<vmem>>, vector<1x32x384xf32>
    %17 = vector.shape_cast %16 : vector<1x32x384xf32> to vector<32x384xf32>
    %18 = vector.shape_cast %14 : vector<32x384xf32> to vector<1x32x384xf32>
    tpu.vector_store %arg7[%15, %c0_11, %c0_12], %18 {strides = array<i32>} : memref<2x32x384xf32, #tpu.memory_space<vmem>>, vector<1x32x384xf32>,
    %c1_i32 = arith.constant 1 : i32
    %19 = arith.index_cast %c1_i32 : i32 to index
    %c0_13 = arith.constant 0 : index
    %c0_14 = arith.constant 0 : index
    %20 = vector.load %arg2[%19, %c0_13, %c0_14] : memref<2x16x384xf32, #tpu.memory_space<vmem>>, vector<1x16x384xf32>
    %21 = vector.shape_cast %20 : vector<1x16x384xf32> to vector<16x384xf32>
    %cst_15 = arith.constant dense<0.000000e+00> : vector<32x384xf32>
    %22 = tpu.matmul %0, %21, %cst_15 {dimension_numbers = #tpu.dot_dimension_numbers<[1], [0], [0], [1], [0, 0, 1, 1], [], []>} : vector<32x16xf32>, vector<16x384xf32>, vector<32x384xf32> -> vector<32x384xf32>
    %23 = vector.broadcast %2 : vector<32x1xf32> to vector<32x384xf32>
    %24 = arith.mulf %22, %23 : vector<32x384xf32>
    %25 = vector.broadcast %3 : vector<32x1xf32> to vector<32x384xf32>
    %26 = arith.addf %24, %25 : vector<32x384xf32>
    %cst_16 = arith.constant 0.000000e+00 : f32
    %27 = vector.broadcast %cst_16 : f32 to vector<32x384xf32>
    %28 = arith.maximumf %26, %27 : vector<32x384xf32>
    %cst_17 = arith.constant dense<0.000000e+00> : vector<32x384xf32>
    %29 = tpu.matmul %1, %28, %cst_17 {dimension_numbers = #tpu.dot_dimension_numbers<[1], [0], [0], [1], [0, 0, 1, 1], [], []>} : vector<32x32xf32>, vector<32x384xf32>, vector<32x384xf32> -> vector<32x384xf32>
    %30 = arith.index_cast %c1_i32 : i32 to index
    %c0_18 = arith.constant 0 : index
    %c0_19 = arith.constant 0 : index
    %31 = vector.load %arg7[%30, %c0_18, %c0_19] : memref<2x32x384xf32, #tpu.memory_space<vmem>>, vector<1x32x384xf32>
    %32 = vector.shape_cast %31 : vector<1x32x384xf32> to vector<32x384xf32>
    %33 = vector.shape_cast %29 : vector<32x384xf32> to vector<1x32x384xf32>
    tpu.vector_store %arg7[%30, %c0_18, %c0_19], %33 {strides = array<i32>} : memref<2x32x384xf32, #tpu.memory_space<vmem>>, vector<1x32x384xf32>,
    %c2_i32 = arith.constant 2 : i32
    return
  }
  func.func @transform_0(%arg0: i32, %arg1: i32) -> (i32, i32, i32) {
    %c0_i32 = arith.constant 0 : i32
    %c0_i32_0 = arith.constant 0 : i32
    return %arg0, %c0_i32, %arg1 : i32, i32, i32
  }
  func.func @transform_1(%arg0: i32, %arg1: i32) -> (i32, i32) {
    %c0_i32 = arith.constant 0 : i32
    %c0_i32_0 = arith.constant 0 : i32
    %c0_i32_1 = arith.constant 0 : i32
    return %c0_i32, %c0_i32_0 : i32, i32
  }
  func.func @transform_2(%arg0: i32, %arg1: i32) -> (i32, i32) {
    %c0_i32 = arith.constant 0 : i32
    %c0_i32_0 = arith.constant 0 : i32
    %c0_i32_1 = arith.constant 0 : i32
    return %c0_i32, %c0_i32_0 : i32, i32
  }
  func.func @transform_3(%arg0: i32, %arg1: i32) -> (i32, i32) {
    %c0_i32 = arith.constant 0 : i32
    %c0_i32_0 = arith.constant 0 : i32
    %c0_i32_1 = arith.constant 0 : i32
    return %c0_i32, %c0_i32_0 : i32, i32
  }
  func.func @transform_4(%arg0: i32, %arg1: i32) -> (i32, i32) {
    %c0_i32 = arith.constant 0 : i32
    %c0_i32_0 = arith.constant 0 : i32
    %c0_i32_1 = arith.constant 0 : i32
    return %c0_i32, %c0_i32_0 : i32, i32
  }
  func.func @transform_5(%arg0: i32, %arg1: i32) -> (i32, i32, i32) {
    %c0_i32 = arith.constant 0 : i32
    %c0_i32_0 = arith.constant 0 : i32
    return %arg0, %c0_i32, %arg1 : i32, i32, i32
  }
}

</mosaic_0001>

<llo_original>
// kernel: conv1d_bn_relu.2
$region0: #{conv1d_bn_relu.2}
  #allocation0 [shape = 'u32[]', space=smem, size = 0x4, offset = 0x4, fixed_abs, tag = 'smem constant byte address 0x4 - core index']
  #allocation1 [shape = 'u32[144,128]{1,0:T(1,128)}', space=vmem, size = 0x12000, scoped, tag = 'internal scratch']
  %s0 = inlined_call_operand.hbm [shape: f32[2,16,384], index: 0, kind: input, shape index: {}]
  %s1 = inlined_call_operand.vmem [shape: f32[1,16,1], index: 1, kind: output, shape index: {0}]
  %s2 = inlined_call_operand.vmem [shape: f32[1,16,16], index: 2, kind: output, shape index: {1}]
  %3 = xla_tuple %s1, %s2
  %s4 = sld [smem:[#allocation0]]
  $region30: #{conv1d_bn_relu.2} parent=0
    _
  %s6 = ssub.s32 1, %s4
  %s7 = scalar_select 0, %s6, %s4
  $region1: #{conv1d_bn_relu.2} parent=0
    #allocation2 [shape = 'u8[49152]{0}', space=vmem, size = 0xc000, scoped, tag = 'input window, operand 0, single buffered']
    #allocation3 [shape = 's32[1]{0}', space=sflag, size = 0x4, scoped, tag = 'scoped memory for conv1d_bn_relu.2']
    %8 = vsyncpa [#allocation3], 0
    // Predicated region
    $region2: #{conv1d_bn_relu.2} parent=1 // pred_check
      _
    $region3: #{conv1d_bn_relu.2} parent=1 // pred_check_branch
      %10 = sbr.rel (0) target = $region5
    $region4: #{conv1d_bn_relu.2} parent=1 // pred_region
      %s12 = ssub.s32 1536, 1536
      %13 = vsyncadd [#allocation3], %s12
      %s14 = sshll.u32 [#allocation2], 4
      %s15 = int_to_ptr.vmem [resolvable:$true] %s14
      %20 = dma.hbm_to_vmem [thread:$0]  %s0, 1536, %s15, [#allocation3], 384, 384, 24
    $region5: #{conv1d_bn_relu.2} parent=1 // pred_fallthru
      _
    // Predicated region
    $region6: #{conv1d_bn_relu.2} parent=1 // pred_check
      _
    $region7: #{conv1d_bn_relu.2} parent=1 // pred_check_branch
      %22 = sbr.rel (0) target = $region9
    $region8: #{conv1d_bn_relu.2} parent=1 // pred_region
      %23 = dma.done [#allocation3], 1536
    $region9: #{conv1d_bn_relu.2} parent=1 // pred_fallthru
      _
    %p24 = scmp.eq.s32.totalorder 0, 0
    // Predicated region
    $region10: #{conv1d_bn_relu.2} parent=1 // pred_check
      %p25 = pneg %p24
    $region11: #{conv1d_bn_relu.2} parent=1 // pred_check_branch
      %27 = sbr.rel (%p25) target = $region13
    $region12: #{conv1d_bn_relu.2} parent=1 // pred_region
      %vm28 = vcmask 7168
      %29 = vst.msk [vmem:[%s1] sm:$0xff] %vm28, 0.0
      %30 = vst.msk [vmem:[%s1 + $0x8] sm:$0xff] %vm28, 0.0
      %vm31 = vcmask 130048
      %32 = vst.msk [vmem:[%s2] sm:$0xff] %vm31, 0.0
      %33 = vst.msk [vmem:[%s2 + $0x8] sm:$0xff] %vm31, 0.0
    $region13: #{conv1d_bn_relu.2} parent=1 // pred_fallthru
      _
    %v34 = vld [vmem:[#allocation2] sm:$0xff]
    %v35 = vld [vmem:[#allocation2 + $0x8] sm:$0xff]
    %v36 = vld [vmem:[#allocation2 + $0x10] sm:$0xff]
    %v37 = vld [vmem:[#allocation2 + $0x18] sm:$0xff]
    %v38 = vld [vmem:[#allocation2 + $0x20] sm:$0xff]
    %v39 = vld [vmem:[#allocation2 + $0x28] sm:$0xff]
    %v40 = vadd.f32 %v34, %v35
    %v41 = vadd.f32 %v40, %v36
    %42 = vadd.xlane.f32.xlu0 %v41
    %v43 = vpop.xlane.xlu0 %42
    %v44 = vadd.f32 %v37, %v38
    %v45 = vadd.f32 %v44, %v39
    %46 = vadd.xlane.f32.xlu0 %v45
    %v47 = vpop.xlane.xlu0 %46
    %v48 = vadd.f32 %v43, 0.0
    %v49 = vadd.f32 %v47, 0.0
    %s50 = scalar_lea.vmem [#allocation2], 48
    %v51 = vld [vmem:[%s50] sm:$0xff]
    %v52 = vld [vmem:[%s50 + $0x8] sm:$0xff]
    %v53 = vld [vmem:[%s50 + $0x10] sm:$0xff]
    %v54 = vld [vmem:[%s50 + $0x18] sm:$0xff]
    %v55 = vld [vmem:[%s50 + $0x20] sm:$0xff]
    %v56 = vld [vmem:[%s50 + $0x28] sm:$0xff]
    %v57 = vadd.f32 %v51, %v52
    %v58 = vadd.f32 %v57, %v53
    %59 = vadd.xlane.f32.xlu0 %v58
    %v60 = vpop.xlane.xlu0 %59
    %v61 = vadd.f32 %v54, %v55
    %v62 = vadd.f32 %v61, %v56
    %63 = vadd.xlane.f32.xlu0 %v62
    %v64 = vpop.xlane.xlu0 %63
    %v65 = vadd.f32 %v48, %v60
    %v66 = vadd.f32 %v49, %v64
    %67 = vmatprep.subr.mxu0 %v52
    %68 = vmatpush1.xpose.msra.mxu0 %v51
    %69 = vmatprep.subr.mxu0 %v55
    %70 = vmatpush1.xpose.msra.mxu0 %v54
    %71 = vmatprep.subr.mxu0 0.0
    %72 = vmatpush1.xpose.msra.mxu0 0.0
    %73 = vmatprep.subr.mxu0 0.0
    %74 = vmatpush1.xpose.msra.mxu0 0.0
    %75 = vmatprep.subr.mxu0 0.0
    %76 = vmatpush1.xpose.msra.mxu0 0.0
    %77 = vmatprep.subr.mxu0 0.0
    %78 = vmatpush1.xpose.msra.mxu0 0.0
    %79 = vmatprep.subr.mxu0 0.0
    %80 = vmatpush1.xpose.msra.mxu0 0.0
    %81 = vmatprep.subr.mxu0 0.0
    %82 = vmatpush1.xpose.msra.mxu0 0.0
    %83 = vmatprep.subr.mxu0 0.0
    %84 = vmatpush1.xpose.msra.mxu0 0.0
    %85 = vmatprep.subr.mxu0 0.0
    %86 = vmatpush1.xpose.msra.mxu0 0.0
    %87 = vmatprep.subr.mxu0 0.0
    %88 = vmatpush1.xpose.msra.mxu0 0.0
    %89 = vmatprep.subr.mxu0 0.0
    %90 = vmatpush1.xpose.msra.mxu0 0.0
    %91 = vmatprep.subr.mxu0 0.0
    %92 = vmatpush1.xpose.msra.mxu0 0.0
    %93 = vmatprep.subr.mxu0 0.0
    %94 = vmatpush1.xpose.msra.mxu0 0.0
    %95 = vmatprep.subr.mxu0 0.0
    %96 = vmatpush1.xpose.msra.mxu0 0.0
    %97 = vmatprep.subr.mxu0 0.0
    %98 = vmatpush1.xpose.msra.mxu0 0.0
    %99 = vmatprep.subr.mxu0 0.0
    %100 = vmatpush1.xpose.msra.mxu0 0.0
    %101 = vmatprep.subr.mxu0 0.0
    %102 = vmatpush1.xpose.msra.mxu0 0.0
    %103 = vmatprep.subr.mxu0 0.0
    %104 = vmatpush1.xpose.msra.mxu0 0.0
    %105 = vmatprep.subr.mxu0 0.0
    %106 = vmatpush1.xpose.msra.mxu0 0.0
    %107 = vmatprep.subr.mxu0 0.0
    %108 = vmatpush1.xpose.msra.mxu0 0.0
    %109 = vmatprep.subr.mxu0 0.0
    %110 = vmatpush1.xpose.msra.mxu0 0.0
    %111 = vmatprep.subr.mxu0 0.0
    %112 = vmatpush1.xpose.msra.mxu0 0.0
    %113 = vmatprep.subr.mxu0 0.0
    %114 = vmatpush1.xpose.msra.mxu0 0.0
    %115 = vmatprep.subr.mxu0 0.0
    %116 = vmatpush1.xpose.msra.mxu0 0.0
    %117 = vmatprep.subr.mxu0 0.0
    %118 = vmatpush1.xpose.msra.mxu0 0.0
    %119 = vmatprep.subr.mxu0 0.0
    %120 = vmatpush1.xpose.msra.mxu0 0.0
    %121 = vmatprep.subr.mxu0 0.0
    %122 = vmatpush1.xpose.msra.mxu0 0.0
    %123 = vmatprep.subr.mxu0 0.0
    %124 = vmatpush1.xpose.msra.mxu0 0.0
    %125 = vmatprep.subr.mxu0 0.0
    %126 = vmatpush1.xpose.msra.mxu0 0.0
    %127 = vmatprep.subr.mxu0 0.0
    %128 = vmatpush1.xpose.msra.mxu0 0.0
    %129 = vmatprep.subr.mxu0 0.0
    %130 = vmatpush1.xpose.msra.mxu0 0.0
    %131 = vmatprep.mubr.f32.mxu0 %v52
    %132 = vmatmul.mubr.f32.gmra.mrb[0].mxu0 %v51
    %v133 = vpop.f32.mrb[0].mxu0
    %v134 = vadd.f32 0.0, %v133
    %v135 = vpop.f32.mrb[0].mxu0
    %136 = vmatprep.mubr.f32.mxu0 %v55
    %137 = vmatmul.mubr.f32.gmra.mrb[0].mxu0 %v54
    %v138 = vpop.f32.mrb[0].mxu0
    %v139 = vadd.f32 0.0, %v138
    %v140 = vpop.f32.mrb[0].mxu0
    %141 = vdwg.mxu0
    %142 = vmatprep.subr.mxu0 0.0
    %143 = vmatpush1.xpose.msra.mxu0 %v53
    %144 = vmatprep.subr.mxu0 0.0
    %145 = vmatpush1.xpose.msra.mxu0 %v56
    %146 = vmatprep.subr.mxu0 0.0
    %147 = vmatpush1.xpose.msra.mxu0 0.0
    %148 = vmatprep.subr.mxu0 0.0
    %149 = vmatpush1.xpose.msra.mxu0 0.0
    %150 = vmatprep.subr.mxu0 0.0
    %151 = vmatpush1.xpose.msra.mxu0 0.0
    %152 = vmatprep.subr.mxu0 0.0
    %153 = vmatpush1.xpose.msra.mxu0 0.0
    %154 = vmatprep.subr.mxu0 0.0
    %155 = vmatpush1.xpose.msra.mxu0 0.0
    %156 = vmatprep.subr.mxu0 0.0
    %157 = vmatpush1.xpose.msra.mxu0 0.0
    %158 = vmatprep.subr.mxu0 0.0
    %159 = vmatpush1.xpose.msra.mxu0 0.0
    %160 = vmatprep.subr.mxu0 0.0
    %161 = vmatpush1.xpose.msra.mxu0 0.0
    %162 = vmatprep.subr.mxu0 0.0
    %163 = vmatpush1.xpose.msra.mxu0 0.0
    %164 = vmatprep.subr.mxu0 0.0
    %165 = vmatpush1.xpose.msra.mxu0 0.0
    %166 = vmatprep.subr.mxu0 0.0
    %167 = vmatpush1.xpose.msra.mxu0 0.0
    %168 = vmatprep.subr.mxu0 0.0
    %169 = vmatpush1.xpose.msra.mxu0 0.0
    %170 = vmatprep.subr.mxu0 0.0
    %171 = vmatpush1.xpose.msra.mxu0 0.0
    %172 = vmatprep.subr.mxu0 0.0
    %173 = vmatpush1.xpose.msra.mxu0 0.0
    %174 = vmatprep.subr.mxu0 0.0
    %175 = vmatpush1.xpose.msra.mxu0 0.0
    %176 = vmatprep.subr.mxu0 0.0
    %177 = vmatpush1.xpose.msra.mxu0 0.0
    %178 = vmatprep.subr.mxu0 0.0
    %179 = vmatpush1.xpose.msra.mxu0 0.0
    %180 = vmatprep.subr.mxu0 0.0
    %181 = vmatpush1.xpose.msra.mxu0 0.0
    %182 = vmatprep.subr.mxu0 0.0
    %183 = vmatpush1.xpose.msra.mxu0 0.0
    %184 = vmatprep.subr.mxu0 0.0
    %185 = vmatpush1.xpose.msra.mxu0 0.0
    %186 = vmatprep.subr.mxu0 0.0
    %187 = vmatpush1.xpose.msra.mxu0 0.0
    %188 = vmatprep.subr.mxu0 0.0
    %189 = vmatpush1.xpose.msra.mxu0 0.0
    %190 = vmatprep.subr.mxu0 0.0
    %191 = vmatpush1.xpose.msra.mxu0 0.0
    %192 = vmatprep.subr.mxu0 0.0
    %193 = vmatpush1.xpose.msra.mxu0 0.0
    %194 = vmatprep.subr.mxu0 0.0
    %195 = vmatpush1.xpose.msra.mxu0 0.0
    %196 = vmatprep.subr.mxu0 0.0
    %197 = vmatpush1.xpose.msra.mxu0 0.0
    %198 = vmatprep.subr.mxu0 0.0
    %199 = vmatpush1.xpose.msra.mxu0 0.0
    %200 = vmatprep.subr.mxu0 0.0
    %201 = vmatpush1.xpose.msra.mxu0 0.0
    %202 = vmatprep.subr.mxu0 0.0
    %203 = vmatpush1.xpose.msra.mxu0 0.0
    %204 = vmatprep.subr.mxu0 0.0
    %205 = vmatpush1.xpose.msra.mxu0 0.0
    %206 = vmatprep.mubr.f32.mxu0 0.0
    %207 = vmatmul.mubr.f32.gmra.mrb[0].mxu0 %v53
    %v208 = vpop.f32.mrb[0].mxu0
    %v209 = vadd.f32 %v134, %v208
    %v210 = vpop.f32.mrb[0].mxu0
    %211 = vmatprep.mubr.f32.mxu0 0.0
    %212 = vmatmul.mubr.f32.gmra.mrb[0].mxu0 %v56
    %v213 = vpop.f32.mrb[0].mxu0
    %v214 = vadd.f32 %v139, %v213
    %v215 = vpop.f32.mrb[0].mxu0
    %216 = vdwg.mxu0
    %217 = vmatprep.subr.mxu0 %v35
    %218 = vmatpush1.xpose.msra.mxu0 %v34
    %219 = vmatprep.subr.mxu0 %v38
    %220 = vmatpush1.xpose.msra.mxu0 %v37
    %221 = vmatprep.subr.mxu0 0.0
    %222 = vmatpush1.xpose.msra.mxu0 0.0
    %223 = vmatprep.subr.mxu0 0.0
    %224 = vmatpush1.xpose.msra.mxu0 0.0
    %225 = vmatprep.subr.mxu0 0.0
    %226 = vmatpush1.xpose.msra.mxu0 0.0
    %227 = vmatprep.subr.mxu0 0.0
    %228 = vmatpush1.xpose.msra.mxu0 0.0
    %229 = vmatprep.subr.mxu0 0.0
    %230 = vmatpush1.xpose.msra.mxu0 0.0
    %231 = vmatprep.subr.mxu0 0.0
    %232 = vmatpush1.xpose.msra.mxu0 0.0
    %233 = vmatprep.subr.mxu0 0.0
    %234 = vmatpush1.xpose.msra.mxu0 0.0
    %235 = vmatprep.subr.mxu0 0.0
    %236 = vmatpush1.xpose.msra.mxu0 0.0
    %237 = vmatprep.subr.mxu0 0.0
    %238 = vmatpush1.xpose.msra.mxu0 0.0
    %239 = vmatprep.subr.mxu0 0.0
    %240 = vmatpush1.xpose.msra.mxu0 0.0
    %241 = vmatprep.subr.mxu0 0.0
    %242 = vmatpush1.xpose.msra.mxu0 0.0
    %243 = vmatprep.subr.mxu0 0.0
    %244 = vmatpush1.xpose.msra.mxu0 0.0
    %245 = vmatprep.subr.mxu0 0.0
    %246 = vmatpush1.xpose.msra.mxu0 0.0
    %247 = vmatprep.subr.mxu0 0.0
    %248 = vmatpush1.xpose.msra.mxu0 0.0
    %249 = vmatprep.subr.mxu0 0.0
    %250 = vmatpush1.xpose.msra.mxu0 0.0
    %251 = vmatprep.subr.mxu0 0.0
    %252 = vmatpush1.xpose.msra.mxu0 0.0
    %253 = vmatprep.subr.mxu0 0.0
    %254 = vmatpush1.xpose.msra.mxu0 0.0
    %255 = vmatprep.subr.mxu0 0.0
    %256 = vmatpush1.xpose.msra.mxu0 0.0
    %257 = vmatprep.subr.mxu0 0.0
    %258 = vmatpush1.xpose.msra.mxu0 0.0
    %259 = vmatprep.subr.mxu0 0.0
    %260 = vmatpush1.xpose.msra.mxu0 0.0
    %261 = vmatprep.subr.mxu0 0.0
    %262 = vmatpush1.xpose.msra.mxu0 0.0
    %263 = vmatprep.subr.mxu0 0.0
    %264 = vmatpush1.xpose.msra.mxu0 0.0
    %265 = vmatprep.subr.mxu0 0.0
    %266 = vmatpush1.xpose.msra.mxu0 0.0
    %267 = vmatprep.subr.mxu0 0.0
    %268 = vmatpush1.xpose.msra.mxu0 0.0
    %269 = vmatprep.subr.mxu0 0.0
    %270 = vmatpush1.xpose.msra.mxu0 0.0
    %271 = vmatprep.subr.mxu0 0.0
    %272 = vmatpush1.xpose.msra.mxu0 0.0
    %273 = vmatprep.subr.mxu0 0.0
    %274 = vmatpush1.xpose.msra.mxu0 0.0
    %275 = vmatprep.subr.mxu0 0.0
    %276 = vmatpush1.xpose.msra.mxu0 0.0
    %277 = vmatprep.subr.mxu0 0.0
    %278 = vmatpush1.xpose.msra.mxu0 0.0
    %279 = vmatprep.subr.mxu0 0.0
    %280 = vmatpush1.xpose.msra.mxu0 0.0
    %281 = vmatprep.mubr.f32.mxu0 %v35
    %282 = vmatmul.mubr.f32.gmra.mrb[0].mxu0 %v34
    %v283 = vpop.f32.mrb[0].mxu0
    %v284 = vadd.f32 %v209, %v283
    %v285 = vpop.f32.mrb[0].mxu0
    %286 = vmatprep.mubr.f32.mxu0 %v38
    %287 = vmatmul.mubr.f32.gmra.mrb[0].mxu0 %v37
    %v288 = vpop.f32.mrb[0].mxu0
    %v289 = vadd.f32 %v214, %v288
    %v290 = vpop.f32.mrb[0].mxu0
    %291 = vdwg.mxu0
    %292 = vmatprep.subr.mxu0 0.0
    %293 = vmatpush1.xpose.msra.mxu0 %v36
    %294 = vmatprep.subr.mxu0 0.0
    %295 = vmatpush1.xpose.msra.mxu0 %v39
    %296 = vmatprep.subr.mxu0 0.0
    %297 = vmatpush1.xpose.msra.mxu0 0.0
    %298 = vmatprep.subr.mxu0 0.0
    %299 = vmatpush1.xpose.msra.mxu0 0.0
    %300 = vmatprep.subr.mxu0 0.0
    %301 = vmatpush1.xpose.msra.mxu0 0.0
    %302 = vmatprep.subr.mxu0 0.0
    %303 = vmatpush1.xpose.msra.mxu0 0.0
    %304 = vmatprep.subr.mxu0 0.0
    %305 = vmatpush1.xpose.msra.mxu0 0.0
    %306 = vmatprep.subr.mxu0 0.0
    %307 = vmatpush1.xpose.msra.mxu0 0.0
    %308 = vmatprep.subr.mxu0 0.0
    %309 = vmatpush1.xpose.msra.mxu0 0.0
    %310 = vmatprep.subr.mxu0 0.0
    %311 = vmatpush1.xpose.msra.mxu0 0.0
    %312 = vmatprep.subr.mxu0 0.0
    %313 = vmatpush1.xpose.msra.mxu0 0.0
    %314 = vmatprep.subr.mxu0 0.0
    %315 = vmatpush1.xpose.msra.mxu0 0.0
    %316 = vmatprep.subr.mxu0 0.0
    %317 = vmatpush1.xpose.msra.mxu0 0.0
    %318 = vmatprep.subr.mxu0 0.0
    %319 = vmatpush1.xpose.msra.mxu0 0.0
    %320 = vmatprep.subr.mxu0 0.0
    %321 = vmatpush1.xpose.msra.mxu0 0.0
    %322 = vmatprep.subr.mxu0 0.0
    %323 = vmatpush1.xpose.msra.mxu0 0.0
    %324 = vmatprep.subr.mxu0 0.0
    %325 = vmatpush1.xpose.msra.mxu0 0.0
    %326 = vmatprep.subr.mxu0 0.0
    %327 = vmatpush1.xpose.msra.mxu0 0.0
    %328 = vmatprep.subr.mxu0 0.0
    %329 = vmatpush1.xpose.msra.mxu0 0.0
    %330 = vmatprep.subr.mxu0 0.0
    %331 = vmatpush1.xpose.msra.mxu0 0.0
    %332 = vmatprep.subr.mxu0 0.0
    %333 = vmatpush1.xpose.msra.mxu0 0.0
    %334 = vmatprep.subr.mxu0 0.0
    %335 = vmatpush1.xpose.msra.mxu0 0.0
    %336 = vmatprep.subr.mxu0 0.0
    %337 = vmatpush1.xpose.msra.mxu0 0.0
    %338 = vmatprep.subr.mxu0 0.0
    %339 = vmatpush1.xpose.msra.mxu0 0.0
    %340 = vmatprep.subr.mxu0 0.0
    %341 = vmatpush1.xpose.msra.mxu0 0.0
    %342 = vmatprep.subr.mxu0 0.0
    %343 = vmatpush1.xpose.msra.mxu0 0.0
    %344 = vmatprep.subr.mxu0 0.0
    %345 = vmatpush1.xpose.msra.mxu0 0.0
    %346 = vmatprep.subr.mxu0 0.0
    %347 = vmatpush1.xpose.msra.mxu0 0.0
    %348 = vmatprep.subr.mxu0 0.0
    %349 = vmatpush1.xpose.msra.mxu0 0.0
    %350 = vmatprep.subr.mxu0 0.0
    %351 = vmatpush1.xpose.msra.mxu0 0.0
    %352 = vmatprep.subr.mxu0 0.0
    %353 = vmatpush1.xpose.msra.mxu0 0.0
    %354 = vmatprep.subr.mxu0 0.0
    %355 = vmatpush1.xpose.msra.mxu0 0.0
    %356 = vmatprep.mubr.f32.mxu0 0.0
    %357 = vmatmul.mubr.f32.gmra.mrb[0].mxu0 %v36
    %v358 = vpop.f32.mrb[0].mxu0
    %v359 = vadd.f32 %v284, %v358
    %v360 = vpop.f32.mrb[0].mxu0
    %361 = vmatprep.mubr.f32.mxu0 0.0
    %362 = vmatmul.mubr.f32.gmra.mrb[0].mxu0 %v39
    %v363 = vpop.f32.mrb[0].mxu0
    %v364 = vadd.f32 %v289, %v363
    %v365 = vpop.f32.mrb[0].mxu0
    %366 = vdwg.mxu0
    %v367 = vld [vmem:[%s1] sm:$0xff]
    %v368 = vld [vmem:[%s1 + $0x8] sm:$0xff]
    %v369 = vadd.f32 %v367, %v65
    %v370 = vadd.f32 %v368, %v66
    %vm371 = vcmask 7168
    %372 = vst.msk [vmem:[%s1] sm:$0xff] %vm371, %v369
    %373 = vst.msk [vmem:[%s1 + $0x8] sm:$0xff] %vm371, %v370
    %v374 = vld [vmem:[%s2] sm:$0xff]
    %v375 = vld [vmem:[%s2 + $0x8] sm:$0xff]
    %v376 = vadd.f32 %v374, %v359
    %v377 = vadd.f32 %v375, %v364
    %vm378 = vcmask 130048
    %379 = vst.msk [vmem:[%s2] sm:$0xff] %vm378, %v376
    %380 = vst.msk [vmem:[%s2 + $0x8] sm:$0xff] %vm378, %v377
    // Predicated region
    $region14: #{conv1d_bn_relu.2} parent=1 // pred_check
      _
    $region15: #{conv1d_bn_relu.2} parent=1 // pred_check_branch
      %382 = sbr.rel (0) target = $region17
    $region16: #{conv1d_bn_relu.2} parent=1 // pred_region
      _
    $region17: #{conv1d_bn_relu.2} parent=1 // pred_fallthru
      _
    // Predicated region
    $region18: #{conv1d_bn_relu.2} parent=1 // pred_check
      _
    $region19: #{conv1d_bn_relu.2} parent=1 // pred_check_branch
      %384 = sbr.rel (0) target = $region21
    $region20: #{conv1d_bn_relu.2} parent=1 // pred_region
      _
    $region21: #{conv1d_bn_relu.2} parent=1 // pred_fallthru
      _
    // Predicated region
    $region22: #{conv1d_bn_relu.2} parent=1 // pred_check
      _
    $region23: #{conv1d_bn_relu.2} parent=1 // pred_check_branch
      %386 = sbr.rel (0) target = $region25
    $region24: #{conv1d_bn_relu.2} parent=1 // pred_region
      _
    $region25: #{conv1d_bn_relu.2} parent=1 // pred_fallthru
      _
    // Predicated region
    $region26: #{conv1d_bn_relu.2} parent=1 // pred_check
      _
    $region27: #{conv1d_bn_relu.2} parent=1 // pred_check_branch
      %388 = sbr.rel (0) target = $region29
    $region28: #{conv1d_bn_relu.2} parent=1 // pred_region
      _
    $region29: #{conv1d_bn_relu.2} parent=1 // pred_fallthru
      _
    %389 = vsyncpa [#allocation3], 1

// kernel: conv1d_bn_relu.3
$region0: #{conv1d_bn_relu.3}
  #allocation0 [shape = 'u32[]', space=smem, size = 0x4, offset = 0x4, fixed_abs, tag = 'smem constant byte address 0x4 - core index']
  #allocation1 [shape = 'u32[144,128]{1,0:T(1,128)}', space=vmem, size = 0x12000, scoped, tag = 'internal scratch']
  %s0 = inlined_call_operand.vmem [shape: f32[2,16,384], index: 0, kind: input, shape index: {}]
  %s1 = inlined_call_operand.vmem [shape: f32[32,16], index: 1, kind: input, shape index: {}]
  %s2 = inlined_call_operand.vmem [shape: f32[32,32], index: 2, kind: input, shape index: {}]
  %s3 = inlined_call_operand.vmem [shape: f32[32,1], index: 3, kind: input, shape index: {}]
  %s4 = inlined_call_operand.vmem [shape: f32[32,1], index: 4, kind: input, shape index: {}]
  %s5 = inlined_call_operand.hbm [shape: f32[2,32,384], index: 5, kind: output, shape index: {}]
  %s6 = sld [smem:[#allocation0]]
  $region30: #{conv1d_bn_relu.3} parent=0
    _
  %s8 = ssub.s32 1, %s6
  %s9 = scalar_select 0, %s8, %s6
  $region1: #{conv1d_bn_relu.3} parent=0
    #allocation2 [shape = 'u8[98304]{0}', space=vmem, size = 0x18000, scoped, tag = 'output window, operand 0, single buffered']
    #allocation3 [shape = 's32[1]{0}', space=sflag, size = 0x4, scoped, tag = 'scoped memory for conv1d_bn_relu.3']
    %10 = vsyncpa [#allocation3], 0
    // Predicated region
    $region2: #{conv1d_bn_relu.3} parent=1 // pred_check
      _
    $region3: #{conv1d_bn_relu.3} parent=1 // pred_check_branch
      %12 = sbr.rel (0) target = $region5
    $region4: #{conv1d_bn_relu.3} parent=1 // pred_region
      _
    $region5: #{conv1d_bn_relu.3} parent=1 // pred_fallthru
      _
    // Predicated region
    $region6: #{conv1d_bn_relu.3} parent=1 // pred_check
      _
    $region7: #{conv1d_bn_relu.3} parent=1 // pred_check_branch
      %14 = sbr.rel (0) target = $region9
    $region8: #{conv1d_bn_relu.3} parent=1 // pred_region
      _
    $region9: #{conv1d_bn_relu.3} parent=1 // pred_fallthru
      _
    // Predicated region
    $region10: #{conv1d_bn_relu.3} parent=1 // pred_check
      _
    $region11: #{conv1d_bn_relu.3} parent=1 // pred_check_branch
      %16 = sbr.rel (0) target = $region13
    $region12: #{conv1d_bn_relu.3} parent=1 // pred_region
      _
    $region13: #{conv1d_bn_relu.3} parent=1 // pred_fallthru
      _
    // Predicated region
    $region14: #{conv1d_bn_relu.3} parent=1 // pred_check
      _
    $region15: #{conv1d_bn_relu.3} parent=1 // pred_check_branch
      %18 = sbr.rel (0) target = $region17
    $region16: #{conv1d_bn_relu.3} parent=1 // pred_region
      _
    $region17: #{conv1d_bn_relu.3} parent=1 // pred_fallthru
      _
    // Predicated region
    $region18: #{conv1d_bn_relu.3} parent=1 // pred_check
      _
    $region19: #{conv1d_bn_relu.3} parent=1 // pred_check_branch
      %20 = sbr.rel (0) target = $region21
    $region20: #{conv1d_bn_relu.3} parent=1 // pred_region
      _
    $region21: #{conv1d_bn_relu.3} parent=1 // pred_fallthru
      _
    %v21 = vld [vmem:[%s1] sm:$0xff]
    %v22 = vld [vmem:[%s1 + $0x8] sm:$0xff]
    %v23 = vld [vmem:[%s1 + $0x10] sm:$0xff]
    %v24 = vld [vmem:[%s1 + $0x18] sm:$0xff]
    %v25 = vld [vmem:[%s2] sm:$0xff]
    %v26 = vld [vmem:[%s2 + $0x8] sm:$0xff]
    %v27 = vld [vmem:[%s2 + $0x10] sm:$0xff]
    %v28 = vld [vmem:[%s2 + $0x18] sm:$0xff]
    %v29 = vld [vmem:[%s3] sm:$0xff]
    %v30 = vld [vmem:[%s3 + $0x8] sm:$0xff]
    %v31 = vld [vmem:[%s3 + $0x10] sm:$0xff]
    %v32 = vld [vmem:[%s3 + $0x18] sm:$0xff]
    %v33 = vld [vmem:[%s4] sm:$0xff]
    %v34 = vld [vmem:[%s4 + $0x8] sm:$0xff]
    %v35 = vld [vmem:[%s4 + $0x10] sm:$0xff]
    %v36 = vld [vmem:[%s4 + $0x18] sm:$0xff]
    %v37 = vld [vmem:[%s0] sm:$0xff]
    %v38 = vld [vmem:[%s0 + $0x8] sm:$0xff]
    %v39 = vld [vmem:[%s0 + $0x10] sm:$0xff]
    %v40 = vld [vmem:[%s0 + $0x18] sm:$0xff]
    %v41 = vld [vmem:[%s0 + $0x20] sm:$0xff]
    %v42 = vld [vmem:[%s0 + $0x28] sm:$0xff]
    %vm43 = vcmask 130048
    %v45 = vsel %vm43, %v21, 0
    %v48 = vsel %vm43, %v22, 0
    %v51 = vsel %vm43, %v23, 0
    %v54 = vsel %vm43, %v24, 0
    %56 = vmatprep.subr.mxu0 %v38
    %57 = vmatpush1.msra.mxu0 %v37
    %58 = vmatprep.subr.mxu0 %v41
    %59 = vmatpush1.msra.mxu0 %v40
    %60 = vmatprep.subr.mxu0 0.0
    %61 = vmatpush1.msra.mxu0 0.0
    %62 = vmatprep.subr.mxu0 0.0
    %63 = vmatpush1.msra.mxu0 0.0
    %64 = vmatprep.subr.mxu0 0.0
    %65 = vmatpush1.msra.mxu0 0.0
    %66 = vmatprep.subr.mxu0 0.0
    %67 = vmatpush1.msra.mxu0 0.0
    %68 = vmatprep.subr.mxu0 0.0
    %69 = vmatpush1.msra.mxu0 0.0
    %70 = vmatprep.subr.mxu0 0.0
    %71 = vmatpush1.msra.mxu0 0.0
    %72 = vmatprep.subr.mxu0 0.0
    %73 = vmatpush1.msra.mxu0 0.0
    %74 = vmatprep.subr.mxu0 0.0
    %75 = vmatpush1.msra.mxu0 0.0
    %76 = vmatprep.subr.mxu0 0.0
    %77 = vmatpush1.msra.mxu0 0.0
    %78 = vmatprep.subr.mxu0 0.0
    %79 = vmatpush1.msra.mxu0 0.0
    %80 = vmatprep.subr.mxu0 0.0
    %81 = vmatpush1.msra.mxu0 0.0
    %82 = vmatprep.subr.mxu0 0.0
    %83 = vmatpush1.msra.mxu0 0.0
    %84 = vmatprep.subr.mxu0 0.0
    %85 = vmatpush1.msra.mxu0 0.0
    %86 = vmatprep.subr.mxu0 0.0
    %87 = vmatpush1.msra.mxu0 0.0
    %88 = vmatprep.subr.mxu0 0.0
    %89 = vmatpush1.msra.mxu0 0.0
    %90 = vmatprep.subr.mxu0 0.0
    %91 = vmatpush1.msra.mxu0 0.0
    %92 = vmatprep.subr.mxu0 0.0
    %93 = vmatpush1.msra.mxu0 0.0
    %94 = vmatprep.subr.mxu0 0.0
    %95 = vmatpush1.msra.mxu0 0.0
    %96 = vmatprep.subr.mxu0 0.0
    %97 = vmatpush1.msra.mxu0 0.0
    %98 = vmatprep.subr.mxu0 0.0
    %99 = vmatpush1.msra.mxu0 0.0
    %100 = vmatprep.subr.mxu0 0.0
    %101 = vmatpush1.msra.mxu0 0.0
    %102 = vmatprep.subr.mxu0 0.0
    %103 = vmatpush1.msra.mxu0 0.0
    %104 = vmatprep.subr.mxu0 0.0
    %105 = vmatpush1.msra.mxu0 0.0
    %106 = vmatprep.subr.mxu0 0.0
    %107 = vmatpush1.msra.mxu0 0.0
    %108 = vmatprep.subr.mxu0 0.0
    %109 = vmatpush1.msra.mxu0 0.0
    %110 = vmatprep.subr.mxu0 0.0
    %111 = vmatpush1.msra.mxu0 0.0
    %112 = vmatprep.subr.mxu0 0.0
    %113 = vmatpush1.msra.mxu0 0.0
    %114 = vmatprep.subr.mxu0 0.0
    %115 = vmatpush1.msra.mxu0 0.0
    %116 = vmatprep.subr.mxu0 0.0
    %117 = vmatpush1.msra.mxu0 0.0
    %118 = vmatprep.subr.mxu0 0.0
    %119 = vmatpush1.msra.mxu0 0.0
    %120 = vmatprep.mubr.f32.mxu0 0.0
    %121 = vmatmul.mubr.f32.gmra.mrb[0].mxu0 %v45
    %v122 = vpop.f32.mrb[0].mxu0
    %v123 = vadd.f32 0.0, %v122
    %v124 = vpop.f32.mrb[0].mxu0
    %v125 = vadd.f32 0.0, %v124
    %126 = vmatprep.mubr.f32.mxu0 0.0
    %127 = vmatmul.mubr.f32.gmra.mrb[0].mxu0 %v48
    %v128 = vpop.f32.mrb[0].mxu0
    %v129 = vadd.f32 0.0, %v128
    %v130 = vpop.f32.mrb[0].mxu0
    %v131 = vadd.f32 0.0, %v130
    %132 = vmatprep.mubr.f32.mxu0 0.0
    %133 = vmatmul.mubr.f32.gmra.mrb[0].mxu0 %v51
    %v134 = vpop.f32.mrb[0].mxu0
    %v135 = vadd.f32 0.0, %v134
    %v136 = vpop.f32.mrb[0].mxu0
    %v137 = vadd.f32 0.0, %v136
    %138 = vmatprep.mubr.f32.mxu0 0.0
    %139 = vmatmul.mubr.f32.gmra.mrb[0].mxu0 %v54
    %v140 = vpop.f32.mrb[0].mxu0
    %v141 = vadd.f32 0.0, %v140
    %v142 = vpop.f32.mrb[0].mxu0
    %v143 = vadd.f32 0.0, %v142
    %144 = vdwg.mxu0
    %145 = vmatprep.subr.mxu0 0.0
    %146 = vmatpush1.msra.mxu0 %v39
    %147 = vmatprep.subr.mxu0 0.0
    %148 = vmatpush1.msra.mxu0 %v42
    %149 = vmatprep.subr.mxu0 0.0
    %150 = vmatpush1.msra.mxu0 0.0
    %151 = vmatprep.subr.mxu0 0.0
    %152 = vmatpush1.msra.mxu0 0.0
    %153 = vmatprep.subr.mxu0 0.0
    %154 = vmatpush1.msra.mxu0 0.0
    %155 = vmatprep.subr.mxu0 0.0
    %156 = vmatpush1.msra.mxu0 0.0
    %157 = vmatprep.subr.mxu0 0.0
    %158 = vmatpush1.msra.mxu0 0.0
    %159 = vmatprep.subr.mxu0 0.0
    %160 = vmatpush1.msra.mxu0 0.0
    %161 = vmatprep.subr.mxu0 0.0
    %162 = vmatpush1.msra.mxu0 0.0
    %163 = vmatprep.subr.mxu0 0.0
    %164 = vmatpush1.msra.mxu0 0.0
    %165 = vmatprep.subr.mxu0 0.0
    %166 = vmatpush1.msra.mxu0 0.0
    %167 = vmatprep.subr.mxu0 0.0
    %168 = vmatpush1.msra.mxu0 0.0
    %169 = vmatprep.subr.mxu0 0.0
    %170 = vmatpush1.msra.mxu0 0.0
    %171 = vmatprep.subr.mxu0 0.0
    %172 = vmatpush1.msra.mxu0 0.0
    %173 = vmatprep.subr.mxu0 0.0
    %174 = vmatpush1.msra.mxu0 0.0
    %175 = vmatprep.subr.mxu0 0.0
    %176 = vmatpush1.msra.mxu0 0.0
    %177 = vmatprep.subr.mxu0 0.0
    %178 = vmatpush1.msra.mxu0 0.0
    %179 = vmatprep.subr.mxu0 0.0
    %180 = vmatpush1.msra.mxu0 0.0
    %181 = vmatprep.subr.mxu0 0.0
    %182 = vmatpush1.msra.mxu0 0.0
    %183 = vmatprep.subr.mxu0 0.0
    %184 = vmatpush1.msra.mxu0 0.0
    %185 = vmatprep.subr.mxu0 0.0
    %186 = vmatpush1.msra.mxu0 0.0
    %187 = vmatprep.subr.mxu0 0.0
    %188 = vmatpush1.msra.mxu0 0.0
    %189 = vmatprep.subr.mxu0 0.0
    %190 = vmatpush1.msra.mxu0 0.0
    %191 = vmatprep.subr.mxu0 0.0
    %192 = vmatpush1.msra.mxu0 0.0
    %193 = vmatprep.subr.mxu0 0.0
    %194 = vmatpush1.msra.mxu0 0.0
    %195 = vmatprep.subr.mxu0 0.0
    %196 = vmatpush1.msra.mxu0 0.0
    %197 = vmatprep.subr.mxu0 0.0
    %198 = vmatpush1.msra.mxu0 0.0
    %199 = vmatprep.subr.mxu0 0.0
    %200 = vmatpush1.msra.mxu0 0.0
    %201 = vmatprep.subr.mxu0 0.0
    %202 = vmatpush1.msra.mxu0 0.0
    %203 = vmatprep.subr.mxu0 0.0
    %204 = vmatpush1.msra.mxu0 0.0
    %205 = vmatprep.subr.mxu0 0.0
    %206 = vmatpush1.msra.mxu0 0.0
    %207 = vmatprep.subr.mxu0 0.0
    %208 = vmatpush1.msra.mxu0 0.0
    %209 = vmatprep.mubr.f32.mxu0 0.0
    %210 = vmatmul.mubr.f32.gmra.mrb[0].mxu0 %v45
    %v211 = vpop.f32.mrb[0].mxu0
    %v212 = vadd.f32 0.0, %v211
    %v213 = vpop.f32.mrb[0].mxu0
    %214 = vmatprep.mubr.f32.mxu0 0.0
    %215 = vmatmul.mubr.f32.gmra.mrb[0].mxu0 %v48
    %v216 = vpop.f32.mrb[0].mxu0
    %v217 = vadd.f32 0.0, %v216
    %v218 = vpop.f32.mrb[0].mxu0
    %219 = vmatprep.mubr.f32.mxu0 0.0
    %220 = vmatmul.mubr.f32.gmra.mrb[0].mxu0 %v51
    %v221 = vpop.f32.mrb[0].mxu0
    %v222 = vadd.f32 0.0, %v221
    %v223 = vpop.f32.mrb[0].mxu0
    %224 = vmatprep.mubr.f32.mxu0 0.0
    %225 = vmatmul.mubr.f32.gmra.mrb[0].mxu0 %v54
    %v226 = vpop.f32.mrb[0].mxu0
    %v227 = vadd.f32 0.0, %v226
    %v228 = vpop.f32.mrb[0].mxu0
    %229 = vdwg.mxu0
    %231 = vset.pattern.permute.xlu0 0
    %232 = vperm.xlu0 %231, %v29
    %v233 = vpop.permute.xlu0 %232
    %236 = vset.pattern.permute.xlu0 0
    %237 = vperm.xlu0 %236, %v30
    %v238 = vpop.permute.xlu0 %237
    %241 = vset.pattern.permute.xlu0 0
    %242 = vperm.xlu0 %241, %v31
    %v243 = vpop.permute.xlu0 %242
    %246 = vset.pattern.permute.xlu0 0
    %247 = vperm.xlu0 %246, %v32
    %v248 = vpop.permute.xlu0 %247
    %v250 = vmul.f32 %v123, %v233
    %v251 = vmul.f32 %v125, %v233
    %v252 = vmul.f32 %v212, %v233
    %v253 = vmul.f32 %v129, %v238
    %v254 = vmul.f32 %v131, %v238
    %v255 = vmul.f32 %v217, %v238
    %v256 = vmul.f32 %v135, %v243
    %v257 = vmul.f32 %v137, %v243
    %v258 = vmul.f32 %v222, %v243
    %v259 = vmul.f32 %v141, %v248
    %v260 = vmul.f32 %v143, %v248
    %v261 = vmul.f32 %v227, %v248
    %263 = vset.pattern.permute.xlu0 0
    %264 = vperm.xlu0 %263, %v33
    %v265 = vpop.permute.xlu0 %264
    %268 = vset.pattern.permute.xlu0 0
    %269 = vperm.xlu0 %268, %v34
    %v270 = vpop.permute.xlu0 %269
    %273 = vset.pattern.permute.xlu0 0
    %274 = vperm.xlu0 %273, %v35
    %v275 = vpop.permute.xlu0 %274
    %278 = vset.pattern.permute.xlu0 0
    %279 = vperm.xlu0 %278, %v36
    %v280 = vpop.permute.xlu0 %279
    %v282 = vadd.f32 %v250, %v265
    %v283 = vadd.f32 %v251, %v265
    %v284 = vadd.f32 %v252, %v265
    %v285 = vadd.f32 %v253, %v270
    %v286 = vadd.f32 %v254, %v270
    %v287 = vadd.f32 %v255, %v270
    %v288 = vadd.f32 %v256, %v275
    %v289 = vadd.f32 %v257, %v275
    %v290 = vadd.f32 %v258, %v275
    %v291 = vadd.f32 %v259, %v280
    %v292 = vadd.f32 %v260, %v280
    %v293 = vadd.f32 %v261, %v280
    %v294 = vmax.f32 %v282, 0.0
    %v295 = vmax.f32 %v283, 0.0
    %v296 = vmax.f32 %v284, 0.0
    %v297 = vmax.f32 %v285, 0.0
    %v298 = vmax.f32 %v286, 0.0
    %v299 = vmax.f32 %v287, 0.0
    %v300 = vmax.f32 %v288, 0.0
    %v301 = vmax.f32 %v289, 0.0
    %v302 = vmax.f32 %v290, 0.0
    %v303 = vmax.f32 %v291, 0.0
    %v304 = vmax.f32 %v292, 0.0
    %v305 = vmax.f32 %v293, 0.0
    %vm306 = vcmask 261120
    %v308 = vsel %vm306, %v25, 0
    %v311 = vsel %vm306, %v26, 0
    %v314 = vsel %vm306, %v27, 0
    %v317 = vsel %vm306, %v28, 0
    %319 = vmatprep.subr.mxu0 %v295
    %320 = vmatpush1.msra.mxu0 %v294
    %321 = vmatprep.subr.mxu0 %v298
    %322 = vmatpush1.msra.mxu0 %v297
    %323 = vmatprep.subr.mxu0 %v301
    %324 = vmatpush1.msra.mxu0 %v300
    %325 = vmatprep.subr.mxu0 %v304
    %326 = vmatpush1.msra.mxu0 %v303
    %327 = vmatprep.subr.mxu0 0.0
    %328 = vmatpush1.msra.mxu0 0.0
    %329 = vmatprep.subr.mxu0 0.0
    %330 = vmatpush1.msra.mxu0 0.0
    %331 = vmatprep.subr.mxu0 0.0
    %332 = vmatpush1.msra.mxu0 0.0
    %333 = vmatprep.subr.mxu0 0.0
    %334 = vmatpush1.msra.mxu0 0.0
    %335 = vmatprep.subr.mxu0 0.0
    %336 = vmatpush1.msra.mxu0 0.0
    %337 = vmatprep.subr.mxu0 0.0
    %338 = vmatpush1.msra.mxu0 0.0
    %339 = vmatprep.subr.mxu0 0.0
    %340 = vmatpush1.msra.mxu0 0.0
    %341 = vmatprep.subr.mxu0 0.0
    %342 = vmatpush1.msra.mxu0 0.0
    %343 = vmatprep.subr.mxu0 0.0
    %344 = vmatpush1.msra.mxu0 0.0
    %345 = vmatprep.subr.mxu0 0.0
    %346 = vmatpush1.msra.mxu0 0.0
    %347 = vmatprep.subr.mxu0 0.0
    %348 = vmatpush1.msra.mxu0 0.0
    %349 = vmatprep.subr.mxu0 0.0
    %350 = vmatpush1.msra.mxu0 0.0
    %351 = vmatprep.subr.mxu0 0.0
    %352 = vmatpush1.msra.mxu0 0.0
    %353 = vmatprep.subr.mxu0 0.0
    %354 = vmatpush1.msra.mxu0 0.0
    %355 = vmatprep.subr.mxu0 0.0
    %356 = vmatpush1.msra.mxu0 0.0
    %357 = vmatprep.subr.mxu0 0.0
    %358 = vmatpush1.msra.mxu0 0.0
    %359 = vmatprep.subr.mxu0 0.0
    %360 = vmatpush1.msra.mxu0 0.0
    %361 = vmatprep.subr.mxu0 0.0
    %362 = vmatpush1.msra.mxu0 0.0
    %363 = vmatprep.subr.mxu0 0.0
    %364 = vmatpush1.msra.mxu0 0.0
    %365 = vmatprep.subr.mxu0 0.0
    %366 = vmatpush1.msra.mxu0 0.0
    %367 = vmatprep.subr.mxu0 0.0
    %368 = vmatpush1.msra.mxu0 0.0
    %369 = vmatprep.subr.mxu0 0.0
    %370 = vmatpush1.msra.mxu0 0.0
    %371 = vmatprep.subr.mxu0 0.0
    %372 = vmatpush1.msra.mxu0 0.0
    %373 = vmatprep.subr.mxu0 0.0
    %374 = vmatpush1.msra.mxu0 0.0
    %375 = vmatprep.subr.mxu0 0.0
    %376 = vmatpush1.msra.mxu0 0.0
    %377 = vmatprep.subr.mxu0 0.0
    %378 = vmatpush1.msra.mxu0 0.0
    %379 = vmatprep.subr.mxu0 0.0
    %380 = vmatpush1.msra.mxu0 0.0
    %381 = vmatprep.subr.mxu0 0.0
    %382 = vmatpush1.msra.mxu0 0.0
    %383 = vmatprep.mubr.f32.mxu0 0.0
    %384 = vmatmul.mubr.f32.gmra.mrb[0].mxu0 %v308
    %v385 = vpop.f32.mrb[0].mxu0
    %v386 = vadd.f32 0.0, %v385
    %v387 = vpop.f32.mrb[0].mxu0
    %v388 = vadd.f32 0.0, %v387
    %389 = vmatprep.mubr.f32.mxu0 0.0
    %390 = vmatmul.mubr.f32.gmra.mrb[0].mxu0 %v311
    %v391 = vpop.f32.mrb[0].mxu0
    %v392 = vadd.f32 0.0, %v391
    %v393 = vpop.f32.mrb[0].mxu0
    %v394 = vadd.f32 0.0, %v393
    %395 = vmatprep.mubr.f32.mxu0 0.0
    %396 = vmatmul.mubr.f32.gmra.mrb[0].mxu0 %v314
    %v397 = vpop.f32.mrb[0].mxu0
    %v398 = vadd.f32 0.0, %v397
    %v399 = vpop.f32.mrb[0].mxu0
    %v400 = vadd.f32 0.0, %v399
    %401 = vmatprep.mubr.f32.mxu0 0.0
    %402 = vmatmul.mubr.f32.gmra.mrb[0].mxu0 %v317
    %v403 = vpop.f32.mrb[0].mxu0
    %v404 = vadd.f32 0.0, %v403
    %v405 = vpop.f32.mrb[0].mxu0
    %v406 = vadd.f32 0.0, %v405
    %407 = vdwg.mxu0
    %408 = vmatprep.subr.mxu0 0.0
    %409 = vmatpush1.msra.mxu0 %v296
    %410 = vmatprep.subr.mxu0 0.0
    %411 = vmatpush1.msra.mxu0 %v299
    %412 = vmatprep.subr.mxu0 0.0
    %413 = vmatpush1.msra.mxu0 %v302
    %414 = vmatprep.subr.mxu0 0.0
    %415 = vmatpush1.msra.mxu0 %v305
    %416 = vmatprep.subr.mxu0 0.0
    %417 = vmatpush1.msra.mxu0 0.0
    %418 = vmatprep.subr.mxu0 0.0
    %419 = vmatpush1.msra.mxu0 0.0
    %420 = vmatprep.subr.mxu0 0.0
    %421 = vmatpush1.msra.mxu0 0.0
    %422 = vmatprep.subr.mxu0 0.0
    %423 = vmatpush1.msra.mxu0 0.0
    %424 = vmatprep.subr.mxu0 0.0
    %425 = vmatpush1.msra.mxu0 0.0
    %426 = vmatprep.subr.mxu0 0.0
    %427 = vmatpush1.msra.mxu0 0.0
    %428 = vmatprep.subr.mxu0 0.0
    %429 = vmatpush1.msra.mxu0 0.0
    %430 = vmatprep.subr.mxu0 0.0
    %431 = vmatpush1.msra.mxu0 0.0
    %432 = vmatprep.subr.mxu0 0.0
    %433 = vmatpush1.msra.mxu0 0.0
    %434 = vmatprep.subr.mxu0 0.0
    %435 = vmatpush1.msra.mxu0 0.0
    %436 = vmatprep.subr.mxu0 0.0
    %437 = vmatpush1.msra.mxu0 0.0
    %438 = vmatprep.subr.mxu0 0.0
    %439 = vmatpush1.msra.mxu0 0.0
    %440 = vmatprep.subr.mxu0 0.0
    %441 = vmatpush1.msra.mxu0 0.0
    %442 = vmatprep.subr.mxu0 0.0
    %443 = vmatpush1.msra.mxu0 0.0
    %444 = vmatprep.subr.mxu0 0.0
    %445 = vmatpush1.msra.mxu0 0.0
    %446 = vmatprep.subr.mxu0 0.0
    %447 = vmatpush1.msra.mxu0 0.0
    %448 = vmatprep.subr.mxu0 0.0
    %449 = vmatpush1.msra.mxu0 0.0
    %450 = vmatprep.subr.mxu0 0.0
    %451 = vmatpush1.msra.mxu0 0.0
    %452 = vmatprep.subr.mxu0 0.0
    %453 = vmatpush1.msra.mxu0 0.0
    %454 = vmatprep.subr.mxu0 0.0
    %455 = vmatpush1.msra.mxu0 0.0
    %456 = vmatprep.subr.mxu0 0.0
    %457 = vmatpush1.msra.mxu0 0.0
    %458 = vmatprep.subr.mxu0 0.0
    %459 = vmatpush1.msra.mxu0 0.0
    %460 = vmatprep.subr.mxu0 0.0
    %461 = vmatpush1.msra.mxu0 0.0
    %462 = vmatprep.subr.mxu0 0.0
    %463 = vmatpush1.msra.mxu0 0.0
    %464 = vmatprep.subr.mxu0 0.0
    %465 = vmatpush1.msra.mxu0 0.0
    %466 = vmatprep.subr.mxu0 0.0
    %467 = vmatpush1.msra.mxu0 0.0
    %468 = vmatprep.subr.mxu0 0.0
    %469 = vmatpush1.msra.mxu0 0.0
    %470 = vmatprep.subr.mxu0 0.0
    %471 = vmatpush1.msra.mxu0 0.0
    %472 = vmatprep.mubr.f32.mxu0 0.0
    %473 = vmatmul.mubr.f32.gmra.mrb[0].mxu0 %v308
    %v474 = vpop.f32.mrb[0].mxu0
    %v475 = vadd.f32 0.0, %v474
    %v476 = vpop.f32.mrb[0].mxu0
    %477 = vmatprep.mubr.f32.mxu0 0.0
    %478 = vmatmul.mubr.f32.gmra.mrb[0].mxu0 %v311
    %v479 = vpop.f32.mrb[0].mxu0
    %v480 = vadd.f32 0.0, %v479
    %v481 = vpop.f32.mrb[0].mxu0
    %482 = vmatprep.mubr.f32.mxu0 0.0
    %483 = vmatmul.mubr.f32.gmra.mrb[0].mxu0 %v314
    %v484 = vpop.f32.mrb[0].mxu0
    %v485 = vadd.f32 0.0, %v484
    %v486 = vpop.f32.mrb[0].mxu0
    %487 = vmatprep.mubr.f32.mxu0 0.0
    %488 = vmatmul.mubr.f32.gmra.mrb[0].mxu0 %v317
    %v489 = vpop.f32.mrb[0].mxu0
    %v490 = vadd.f32 0.0, %v489
    %v491 = vpop.f32.mrb[0].mxu0
    %492 = vdwg.mxu0
    %493 = vst [vmem:[#allocation2] sm:$0xff] %v386
    %494 = vst [vmem:[#allocation2 + $0x8] sm:$0xff] %v388
    %495 = vst [vmem:[#allocation2 + $0x10] sm:$0xff] %v475
    %496 = vst [vmem:[#allocation2 + $0x18] sm:$0xff] %v392
    %497 = vst [vmem:[#allocation2 + $0x20] sm:$0xff] %v394
    %498 = vst [vmem:[#allocation2 + $0x28] sm:$0xff] %v480
    %499 = vst [vmem:[#allocation2 + $0x30] sm:$0xff] %v398
    %500 = vst [vmem:[#allocation2 + $0x38] sm:$0xff] %v400
    %501 = vst [vmem:[#allocation2 + $0x40] sm:$0xff] %v485
    %502 = vst [vmem:[#allocation2 + $0x48] sm:$0xff] %v404
    %503 = vst [vmem:[#allocation2 + $0x50] sm:$0xff] %v406
    %504 = vst [vmem:[#allocation2 + $0x58] sm:$0xff] %v490
    %s505 = scalar_lea.vmem %s0, 48
    %v506 = vld [vmem:[%s505] sm:$0xff]
    %v507 = vld [vmem:[%s505 + $0x8] sm:$0xff]
    %v508 = vld [vmem:[%s505 + $0x10] sm:$0xff]
    %v509 = vld [vmem:[%s505 + $0x18] sm:$0xff]
    %v510 = vld [vmem:[%s505 + $0x20] sm:$0xff]
    %v511 = vld [vmem:[%s505 + $0x28] sm:$0xff]
    %512 = vmatprep.subr.mxu0 %v507
    %513 = vmatpush1.msra.mxu0 %v506
    %514 = vmatprep.subr.mxu0 %v510
    %515 = vmatpush1.msra.mxu0 %v509
    %516 = vmatprep.subr.mxu0 0.0
    %517 = vmatpush1.msra.mxu0 0.0
    %518 = vmatprep.subr.mxu0 0.0
    %519 = vmatpush1.msra.mxu0 0.0
    %520 = vmatprep.subr.mxu0 0.0
    %521 = vmatpush1.msra.mxu0 0.0
    %522 = vmatprep.subr.mxu0 0.0
    %523 = vmatpush1.msra.mxu0 0.0
    %524 = vmatprep.subr.mxu0 0.0
    %525 = vmatpush1.msra.mxu0 0.0
    %526 = vmatprep.subr.mxu0 0.0
    %527 = vmatpush1.msra.mxu0 0.0
    %528 = vmatprep.subr.mxu0 0.0
    %529 = vmatpush1.msra.mxu0 0.0
    %530 = vmatprep.subr.mxu0 0.0
    %531 = vmatpush1.msra.mxu0 0.0
    %532 = vmatprep.subr.mxu0 0.0
    %533 = vmatpush1.msra.mxu0 0.0
    %534 = vmatprep.subr.mxu0 0.0
    %535 = vmatpush1.msra.mxu0 0.0
    %536 = vmatprep.subr.mxu0 0.0
    %537 = vmatpush1.msra.mxu0 0.0
    %538 = vmatprep.subr.mxu0 0.0
    %539 = vmatpush1.msra.mxu0 0.0
    %540 = vmatprep.subr.mxu0 0.0
    %541 = vmatpush1.msra.mxu0 0.0
    %542 = vmatprep.subr.mxu0 0.0
    %543 = vmatpush1.msra.mxu0 0.0
    %544 = vmatprep.subr.mxu0 0.0
    %545 = vmatpush1.msra.mxu0 0.0
    %546 = vmatprep.subr.mxu0 0.0
    %547 = vmatpush1.msra.mxu0 0.0
    %548 = vmatprep.subr.mxu0 0.0
    %549 = vmatpush1.msra.mxu0 0.0
    %550 = vmatprep.subr.mxu0 0.0
    %551 = vmatpush1.msra.mxu0 0.0
    %552 = vmatprep.subr.mxu0 0.0
    %553 = vmatpush1.msra.mxu0 0.0
    %554 = vmatprep.subr.mxu0 0.0
    %555 = vmatpush1.msra.mxu0 0.0
    %556 = vmatprep.subr.mxu0 0.0
    %557 = vmatpush1.msra.mxu0 0.0
    %558 = vmatprep.subr.mxu0 0.0
    %559 = vmatpush1.msra.mxu0 0.0
    %560 = vmatprep.subr.mxu0 0.0
    %561 = vmatpush1.msra.mxu0 0.0
    %562 = vmatprep.subr.mxu0 0.0
    %563 = vmatpush1.msra.mxu0 0.0
    %564 = vmatprep.subr.mxu0 0.0
    %565 = vmatpush1.msra.mxu0 0.0
    %566 = vmatprep.subr.mxu0 0.0
    %567 = vmatpush1.msra.mxu0 0.0
    %568 = vmatprep.subr.mxu0 0.0
    %569 = vmatpush1.msra.mxu0 0.0
    %570 = vmatprep.subr.mxu0 0.0
    %571 = vmatpush1.msra.mxu0 0.0
    %572 = vmatprep.subr.mxu0 0.0
    %573 = vmatpush1.msra.mxu0 0.0
    %574 = vmatprep.subr.mxu0 0.0
    %575 = vmatpush1.msra.mxu0 0.0
    %576 = vmatprep.mubr.f32.mxu0 0.0
    %577 = vmatmul.mubr.f32.gmra.mrb[0].mxu0 %v45
    %v578 = vpop.f32.mrb[0].mxu0
    %v579 = vadd.f32 0.0, %v578
    %v580 = vpop.f32.mrb[0].mxu0
    %v581 = vadd.f32 0.0, %v580
    %582 = vmatprep.mubr.f32.mxu0 0.0
    %583 = vmatmul.mubr.f32.gmra.mrb[0].mxu0 %v48
    %v584 = vpop.f32.mrb[0].mxu0
    %v585 = vadd.f32 0.0, %v584
    %v586 = vpop.f32.mrb[0].mxu0
    %v587 = vadd.f32 0.0, %v586
    %588 = vmatprep.mubr.f32.mxu0 0.0
    %589 = vmatmul.mubr.f32.gmra.mrb[0].mxu0 %v51
    %v590 = vpop.f32.mrb[0].mxu0
    %v591 = vadd.f32 0.0, %v590
    %v592 = vpop.f32.mrb[0].mxu0
    %v593 = vadd.f32 0.0, %v592
    %594 = vmatprep.mubr.f32.mxu0 0.0
    %595 = vmatmul.mubr.f32.gmra.mrb[0].mxu0 %v54
    %v596 = vpop.f32.mrb[0].mxu0
    %v597 = vadd.f32 0.0, %v596
    %v598 = vpop.f32.mrb[0].mxu0
    %v599 = vadd.f32 0.0, %v598
    %600 = vdwg.mxu0
    %601 = vmatprep.subr.mxu0 0.0
    %602 = vmatpush1.msra.mxu0 %v508
    %603 = vmatprep.subr.mxu0 0.0
    %604 = vmatpush1.msra.mxu0 %v511
    %605 = vmatprep.subr.mxu0 0.0
    %606 = vmatpush1.msra.mxu0 0.0
    %607 = vmatprep.subr.mxu0 0.0
    %608 = vmatpush1.msra.mxu0 0.0
    %609 = vmatprep.subr.mxu0 0.0
    %610 = vmatpush1.msra.mxu0 0.0
    %611 = vmatprep.subr.mxu0 0.0
    %612 = vmatpush1.msra.mxu0 0.0
    %613 = vmatprep.subr.mxu0 0.0
    %614 = vmatpush1.msra.mxu0 0.0
    %615 = vmatprep.subr.mxu0 0.0
    %616 = vmatpush1.msra.mxu0 0.0
    %617 = vmatprep.subr.mxu0 0.0
    %618 = vmatpush1.msra.mxu0 0.0
    %619 = vmatprep.subr.mxu0 0.0
    %620 = vmatpush1.msra.mxu0 0.0
    %621 = vmatprep.subr.mxu0 0.0
    %622 = vmatpush1.msra.mxu0 0.0
    %623 = vmatprep.subr.mxu0 0.0
    %624 = vmatpush1.msra.mxu0 0.0
    %625 = vmatprep.subr.mxu0 0.0
    %626 = vmatpush1.msra.mxu0 0.0
    %627 = vmatprep.subr.mxu0 0.0
    %628 = vmatpush1.msra.mxu0 0.0
    %629 = vmatprep.subr.mxu0 0.0
    %630 = vmatpush1.msra.mxu0 0.0
    %631 = vmatprep.subr.mxu0 0.0
    %632 = vmatpush1.msra.mxu0 0.0
    %633 = vmatprep.subr.mxu0 0.0
    %634 = vmatpush1.msra.mxu0 0.0
    %635 = vmatprep.subr.mxu0 0.0
    %636 = vmatpush1.msra.mxu0 0.0
    %637 = vmatprep.subr.mxu0 0.0
    %638 = vmatpush1.msra.mxu0 0.0
    %639 = vmatprep.subr.mxu0 0.0
    %640 = vmatpush1.msra.mxu0 0.0
    %641 = vmatprep.subr.mxu0 0.0
    %642 = vmatpush1.msra.mxu0 0.0
    %643 = vmatprep.subr.mxu0 0.0
    %644 = vmatpush1.msra.mxu0 0.0
    %645 = vmatprep.subr.mxu0 0.0
    %646 = vmatpush1.msra.mxu0 0.0
    %647 = vmatprep.subr.mxu0 0.0
    %648 = vmatpush1.msra.mxu0 0.0
    %649 = vmatprep.subr.mxu0 0.0
    %650 = vmatpush1.msra.mxu0 0.0
    %651 = vmatprep.subr.mxu0 0.0
    %652 = vmatpush1.msra.mxu0 0.0
    %653 = vmatprep.subr.mxu0 0.0
    %654 = vmatpush1.msra.mxu0 0.0
    %655 = vmatprep.subr.mxu0 0.0
    %656 = vmatpush1.msra.mxu0 0.0
    %657 = vmatprep.subr.mxu0 0.0
    %658 = vmatpush1.msra.mxu0 0.0
    %659 = vmatprep.subr.mxu0 0.0
    %660 = vmatpush1.msra.mxu0 0.0
    %661 = vmatprep.subr.mxu0 0.0
    %662 = vmatpush1.msra.mxu0 0.0
    %663 = vmatprep.subr.mxu0 0.0
    %664 = vmatpush1.msra.mxu0 0.0
    %665 = vmatprep.mubr.f32.mxu0 0.0
    %666 = vmatmul.mubr.f32.gmra.mrb[0].mxu0 %v45
    %v667 = vpop.f32.mrb[0].mxu0
    %v668 = vadd.f32 0.0, %v667
    %v669 = vpop.f32.mrb[0].mxu0
    %670 = vmatprep.mubr.f32.mxu0 0.0
    %671 = vmatmul.mubr.f32.gmra.mrb[0].mxu0 %v48
    %v672 = vpop.f32.mrb[0].mxu0
    %v673 = vadd.f32 0.0, %v672
    %v674 = vpop.f32.mrb[0].mxu0
    %675 = vmatprep.mubr.f32.mxu0 0.0
    %676 = vmatmul.mubr.f32.gmra.mrb[0].mxu0 %v51
    %v677 = vpop.f32.mrb[0].mxu0
    %v678 = vadd.f32 0.0, %v677
    %v679 = vpop.f32.mrb[0].mxu0
    %680 = vmatprep.mubr.f32.mxu0 0.0
    %681 = vmatmul.mubr.f32.gmra.mrb[0].mxu0 %v54
    %v682 = vpop.f32.mrb[0].mxu0
    %v683 = vadd.f32 0.0, %v682
    %v684 = vpop.f32.mrb[0].mxu0
    %685 = vdwg.mxu0
    %v686 = vmul.f32 %v579, %v233
    %v687 = vmul.f32 %v581, %v233
    %v688 = vmul.f32 %v668, %v233
    %v689 = vmul.f32 %v585, %v238
    %v690 = vmul.f32 %v587, %v238
    %v691 = vmul.f32 %v673, %v238
    %v692 = vmul.f32 %v591, %v243
    %v693 = vmul.f32 %v593, %v243
    %v694 = vmul.f32 %v678, %v243
    %v695 = vmul.f32 %v597, %v248
    %v696 = vmul.f32 %v599, %v248
    %v697 = vmul.f32 %v683, %v248
    %v698 = vadd.f32 %v686, %v265
    %v699 = vadd.f32 %v687, %v265
    %v700 = vadd.f32 %v688, %v265
    %v701 = vadd.f32 %v689, %v270
    %v702 = vadd.f32 %v690, %v270
    %v703 = vadd.f32 %v691, %v270
    %v704 = vadd.f32 %v692, %v275
    %v705 = vadd.f32 %v693, %v275
    %v706 = vadd.f32 %v694, %v275
    %v707 = vadd.f32 %v695, %v280
    %v708 = vadd.f32 %v696, %v280
    %v709 = vadd.f32 %v697, %v280
    %v710 = vmax.f32 %v698, 0.0
    %v711 = vmax.f32 %v699, 0.0
    %v712 = vmax.f32 %v700, 0.0
    %v713 = vmax.f32 %v701, 0.0
    %v714 = vmax.f32 %v702, 0.0
    %v715 = vmax.f32 %v703, 0.0
    %v716 = vmax.f32 %v704, 0.0
    %v717 = vmax.f32 %v705, 0.0
    %v718 = vmax.f32 %v706, 0.0
    %v719 = vmax.f32 %v707, 0.0
    %v720 = vmax.f32 %v708, 0.0
    %v721 = vmax.f32 %v709, 0.0
    %722 = vmatprep.subr.mxu0 %v711
    %723 = vmatpush1.msra.mxu0 %v710
    %724 = vmatprep.subr.mxu0 %v714
    %725 = vmatpush1.msra.mxu0 %v713
    %726 = vmatprep.subr.mxu0 %v717
    %727 = vmatpush1.msra.mxu0 %v716
    %728 = vmatprep.subr.mxu0 %v720
    %729 = vmatpush1.msra.mxu0 %v719
    %730 = vmatprep.subr.mxu0 0.0
    %731 = vmatpush1.msra.mxu0 0.0
    %732 = vmatprep.subr.mxu0 0.0
    %733 = vmatpush1.msra.mxu0 0.0
    %734 = vmatprep.subr.mxu0 0.0
    %735 = vmatpush1.msra.mxu0 0.0
    %736 = vmatprep.subr.mxu0 0.0
    %737 = vmatpush1.msra.mxu0 0.0
    %738 = vmatprep.subr.mxu0 0.0
    %739 = vmatpush1.msra.mxu0 0.0
    %740 = vmatprep.subr.mxu0 0.0
    %741 = vmatpush1.msra.mxu0 0.0
    %742 = vmatprep.subr.mxu0 0.0
    %743 = vmatpush1.msra.mxu0 0.0
    %744 = vmatprep.subr.mxu0 0.0
    %745 = vmatpush1.msra.mxu0 0.0
    %746 = vmatprep.subr.mxu0 0.0
    %747 = vmatpush1.msra.mxu0 0.0
    %748 = vmatprep.subr.mxu0 0.0
    %749 = vmatpush1.msra.mxu0 0.0
    %750 = vmatprep.subr.mxu0 0.0
    %751 = vmatpush1.msra.mxu0 0.0
    %752 = vmatprep.subr.mxu0 0.0
    %753 = vmatpush1.msra.mxu0 0.0
    %754 = vmatprep.subr.mxu0 0.0
    %755 = vmatpush1.msra.mxu0 0.0
    %756 = vmatprep.subr.mxu0 0.0
    %757 = vmatpush1.msra.mxu0 0.0
    %758 = vmatprep.subr.mxu0 0.0
    %759 = vmatpush1.msra.mxu0 0.0
    %760 = vmatprep.subr.mxu0 0.0
    %761 = vmatpush1.msra.mxu0 0.0
    %762 = vmatprep.subr.mxu0 0.0
    %763 = vmatpush1.msra.mxu0 0.0
    %764 = vmatprep.subr.mxu0 0.0
    %765 = vmatpush1.msra.mxu0 0.0
    %766 = vmatprep.subr.mxu0 0.0
    %767 = vmatpush1.msra.mxu0 0.0
    %768 = vmatprep.subr.mxu0 0.0
    %769 = vmatpush1.msra.mxu0 0.0
    %770 = vmatprep.subr.mxu0 0.0
    %771 = vmatpush1.msra.mxu0 0.0
    %772 = vmatprep.subr.mxu0 0.0
    %773 = vmatpush1.msra.mxu0 0.0
    %774 = vmatprep.subr.mxu0 0.0
    %775 = vmatpush1.msra.mxu0 0.0
    %776 = vmatprep.subr.mxu0 0.0
    %777 = vmatpush1.msra.mxu0 0.0
    %778 = vmatprep.subr.mxu0 0.0
    %779 = vmatpush1.msra.mxu0 0.0
    %780 = vmatprep.subr.mxu0 0.0
    %781 = vmatpush1.msra.mxu0 0.0
    %782 = vmatprep.subr.mxu0 0.0
    %783 = vmatpush1.msra.mxu0 0.0
    %784 = vmatprep.subr.mxu0 0.0
    %785 = vmatpush1.msra.mxu0 0.0
    %786 = vmatprep.mubr.f32.mxu0 0.0
    %787 = vmatmul.mubr.f32.gmra.mrb[0].mxu0 %v308
    %v788 = vpop.f32.mrb[0].mxu0
    %v789 = vadd.f32 0.0, %v788
    %v790 = vpop.f32.mrb[0].mxu0
    %v791 = vadd.f32 0.0, %v790
    %792 = vmatprep.mubr.f32.mxu0 0.0
    %793 = vmatmul.mubr.f32.gmra.mrb[0].mxu0 %v311
    %v794 = vpop.f32.mrb[0].mxu0
    %v795 = vadd.f32 0.0, %v794
    %v796 = vpop.f32.mrb[0].mxu0
    %v797 = vadd.f32 0.0, %v796
    %798 = vmatprep.mubr.f32.mxu0 0.0
    %799 = vmatmul.mubr.f32.gmra.mrb[0].mxu0 %v314
    %v800 = vpop.f32.mrb[0].mxu0
    %v801 = vadd.f32 0.0, %v800
    %v802 = vpop.f32.mrb[0].mxu0
    %v803 = vadd.f32 0.0, %v802
    %804 = vmatprep.mubr.f32.mxu0 0.0
    %805 = vmatmul.mubr.f32.gmra.mrb[0].mxu0 %v317
    %v806 = vpop.f32.mrb[0].mxu0
    %v807 = vadd.f32 0.0, %v806
    %v808 = vpop.f32.mrb[0].mxu0
    %v809 = vadd.f32 0.0, %v808
    %810 = vdwg.mxu0
    %811 = vmatprep.subr.mxu0 0.0
    %812 = vmatpush1.msra.mxu0 %v712
    %813 = vmatprep.subr.mxu0 0.0
    %814 = vmatpush1.msra.mxu0 %v715
    %815 = vmatprep.subr.mxu0 0.0
    %816 = vmatpush1.msra.mxu0 %v718
    %817 = vmatprep.subr.mxu0 0.0
    %818 = vmatpush1.msra.mxu0 %v721
    %819 = vmatprep.subr.mxu0 0.0
    %820 = vmatpush1.msra.mxu0 0.0
    %821 = vmatprep.subr.mxu0 0.0
    %822 = vmatpush1.msra.mxu0 0.0
    %823 = vmatprep.subr.mxu0 0.0
    %824 = vmatpush1.msra.mxu0 0.0
    %825 = vmatprep.subr.mxu0 0.0
    %826 = vmatpush1.msra.mxu0 0.0
    %827 = vmatprep.subr.mxu0 0.0
    %828 = vmatpush1.msra.mxu0 0.0
    %829 = vmatprep.subr.mxu0 0.0
    %830 = vmatpush1.msra.mxu0 0.0
    %831 = vmatprep.subr.mxu0 0.0
    %832 = vmatpush1.msra.mxu0 0.0
    %833 = vmatprep.subr.mxu0 0.0
    %834 = vmatpush1.msra.mxu0 0.0
    %835 = vmatprep.subr.mxu0 0.0
    %836 = vmatpush1.msra.mxu0 0.0
    %837 = vmatprep.subr.mxu0 0.0
    %838 = vmatpush1.msra.mxu0 0.0
    %839 = vmatprep.subr.mxu0 0.0
    %840 = vmatpush1.msra.mxu0 0.0
    %841 = vmatprep.subr.mxu0 0.0
    %842 = vmatpush1.msra.mxu0 0.0
    %843 = vmatprep.subr.mxu0 0.0
    %844 = vmatpush1.msra.mxu0 0.0
    %845 = vmatprep.subr.mxu0 0.0
    %846 = vmatpush1.msra.mxu0 0.0
    %847 = vmatprep.subr.mxu0 0.0
    %848 = vmatpush1.msra.mxu0 0.0
    %849 = vmatprep.subr.mxu0 0.0
    %850 = vmatpush1.msra.mxu0 0.0
    %851 = vmatprep.subr.mxu0 0.0
    %852 = vmatpush1.msra.mxu0 0.0
    %853 = vmatprep.subr.mxu0 0.0
    %854 = vmatpush1.msra.mxu0 0.0
    %855 = vmatprep.subr.mxu0 0.0
    %856 = vmatpush1.msra.mxu0 0.0
    %857 = vmatprep.subr.mxu0 0.0
    %858 = vmatpush1.msra.mxu0 0.0
    %859 = vmatprep.subr.mxu0 0.0
    %860 = vmatpush1.msra.mxu0 0.0
    %861 = vmatprep.subr.mxu0 0.0
    %862 = vmatpush1.msra.mxu0 0.0
    %863 = vmatprep.subr.mxu0 0.0
    %864 = vmatpush1.msra.mxu0 0.0
    %865 = vmatprep.subr.mxu0 0.0
    %866 = vmatpush1.msra.mxu0 0.0
    %867 = vmatprep.subr.mxu0 0.0
    %868 = vmatpush1.msra.mxu0 0.0
    %869 = vmatprep.subr.mxu0 0.0
    %870 = vmatpush1.msra.mxu0 0.0
    %871 = vmatprep.subr.mxu0 0.0
    %872 = vmatpush1.msra.mxu0 0.0
    %873 = vmatprep.subr.mxu0 0.0
    %874 = vmatpush1.msra.mxu0 0.0
    %875 = vmatprep.mubr.f32.mxu0 0.0
    %876 = vmatmul.mubr.f32.gmra.mrb[0].mxu0 %v308
    %v877 = vpop.f32.mrb[0].mxu0
    %v878 = vadd.f32 0.0, %v877
    %v879 = vpop.f32.mrb[0].mxu0
    %880 = vmatprep.mubr.f32.mxu0 0.0
    %881 = vmatmul.mubr.f32.gmra.mrb[0].mxu0 %v311
    %v882 = vpop.f32.mrb[0].mxu0
    %v883 = vadd.f32 0.0, %v882
    %v884 = vpop.f32.mrb[0].mxu0
    %885 = vmatprep.mubr.f32.mxu0 0.0
    %886 = vmatmul.mubr.f32.gmra.mrb[0].mxu0 %v314
    %v887 = vpop.f32.mrb[0].mxu0
    %v888 = vadd.f32 0.0, %v887
    %v889 = vpop.f32.mrb[0].mxu0
    %890 = vmatprep.mubr.f32.mxu0 0.0
    %891 = vmatmul.mubr.f32.gmra.mrb[0].mxu0 %v317
    %v892 = vpop.f32.mrb[0].mxu0
    %v893 = vadd.f32 0.0, %v892
    %v894 = vpop.f32.mrb[0].mxu0
    %895 = vdwg.mxu0
    %s896 = scalar_lea.vmem [#allocation2], 96
    %897 = vst [vmem:[%s896] sm:$0xff] %v789
    %898 = vst [vmem:[%s896 + $0x8] sm:$0xff] %v791
    %899 = vst [vmem:[%s896 + $0x10] sm:$0xff] %v878
    %900 = vst [vmem:[%s896 + $0x18] sm:$0xff] %v795
    %901 = vst [vmem:[%s896 + $0x20] sm:$0xff] %v797
    %902 = vst [vmem:[%s896 + $0x28] sm:$0xff] %v883
    %903 = vst [vmem:[%s896 + $0x30] sm:$0xff] %v801
    %904 = vst [vmem:[%s896 + $0x38] sm:$0xff] %v803
    %905 = vst [vmem:[%s896 + $0x40] sm:$0xff] %v888
    %906 = vst [vmem:[%s896 + $0x48] sm:$0xff] %v807
    %907 = vst [vmem:[%s896 + $0x50] sm:$0xff] %v809
    %908 = vst [vmem:[%s896 + $0x58] sm:$0xff] %v893
    // Predicated region
    $region22: #{conv1d_bn_relu.3} parent=1 // pred_check
      _
    $region23: #{conv1d_bn_relu.3} parent=1 // pred_check_branch
      %910 = sbr.rel (0) target = $region25
    $region24: #{conv1d_bn_relu.3} parent=1 // pred_region
      %s912 = ssub.s32 3072, 3072
      %913 = vsyncadd [#allocation3], %s912
      %s914 = sshll.u32 [#allocation2], 4
      %s915 = int_to_ptr.vmem [resolvable:$true] %s914
      %920 = dma.vmem_to_hbm [thread:$0]  %s915, 3072, %s5, [#allocation3], 384, 384, 24
    $region25: #{conv1d_bn_relu.3} parent=1 // pred_fallthru
      _
    // Predicated region
    $region26: #{conv1d_bn_relu.3} parent=1 // pred_check
      _
    $region27: #{conv1d_bn_relu.3} parent=1 // pred_check_branch
      %922 = sbr.rel (0) target = $region29
    $region28: #{conv1d_bn_relu.3} parent=1 // pred_region
      %923 = dma.done [#allocation3], 3072
    $region29: #{conv1d_bn_relu.3} parent=1 // pred_fallthru
      _
    %924 = vsyncpa [#allocation3], 1

</llo_original>
